<compile_context>
chip_gen: v7x
topology: tpu7x:2x2x1
jax: 0.10.0
libtpu: 0.0.40
codegen_flags: <defaults>
</compile_context>

<pallas_src>
import functools

import jax
import jax.numpy as jnp
from jax.experimental import pallas as pl
from jax.experimental.pallas import tpu as pltpu


# ----------------------------------------------------------------------------
# In-kernel layout folds (static `bt`, `d`; bt == 1 is a no-op so the demo path
# has zero in-kernel reshapes/transposes).
# ----------------------------------------------------------------------------
def _fold_rows_to_nodes(a, bt, d):
    """(bt*d, f), rows ordered (batch, node)  ->  (d, bt*f) node-major."""
    if bt == 1:
        return a
    f = a.shape[-1]
    return a.reshape(bt, d, f).transpose(1, 0, 2).reshape(d, bt * f)


def _fold_nodes_to_rows(a, bt, d):
    """(d, bt*f) node-major  ->  (bt*d, f), rows ordered (batch, node)."""
    if bt == 1:
        return a
    f = a.shape[-1] // bt
    return a.reshape(d, bt, f).transpose(1, 0, 2).reshape(bt * d, f)


# ----------------------------------------------------------------------------
# Fused encoder-MLP + adjacency matmuls + decoder-MLP kernel.
# Grid iterates over batch tiles of `bt` elements each.
# ----------------------------------------------------------------------------
def _dag_gnn_kernel(
    x_ref,        # (bt*D, X)  rows = (batch-in-tile, node)
    enc_adj_ref,  # (D, D)     I - sinh(3A)^T
    dec_adj_ref,  # (D, D)     inv(I - sinh(3A)^T)
    w1_ref,       # (X, H_enc)
    b1_ref,       # (1, H_enc)
    w2_ref,       # (H_enc, Z)
    b2_ref,       # (1, Z)
    wd1_ref,      # (Z, H_dec)
    bd1_ref,      # (1, H_dec)
    wd2_ref,      # (H_dec, X)
    bd2_ref,      # (1, X)
    wa_ref,       # (1, bt*Z)  Wa tiled once per batch element of the tile
    logits_ref,   # (1, D, bt*Z)
    out_ref,      # (1, D, bt*X)
    *, bt, d,
):
    x = x_ref[...]                                             # (bt*D, X)

    # ---- MLPEncoder: two matmuls with M = bt*D ----
    h1 = jnp.dot(x, w1_ref[...], preferred_element_type=jnp.float32) + b1_ref[...]
    h1 = jnp.maximum(h1, 0.0)                                  # ReLU
    z = jnp.dot(h1, w2_ref[...], preferred_element_type=jnp.float32) + b2_ref[...]

    # Fold batch into the N dimension so each (D,D) adjacency matmul sees N = bt*Z.
    zb = _fold_rows_to_nodes(z, bt, d)                         # (D, bt*Z)
    wa = wa_ref[...]                                           # (1, bt*Z)
    logits = jnp.dot(enc_adj_ref[...], zb + wa,
                     preferred_element_type=jnp.float32) - wa
    logits_ref[0] = logits                                     # lane-dense store

    # ---- MLPDecoder ----
    mat_z = jnp.dot(dec_adj_ref[...], logits + wa,
                    preferred_element_type=jnp.float32) - wa   # (D, bt*Z)
    mz = _fold_nodes_to_rows(mat_z, bt, d)                     # (bt*D, Z)
    h3 = jnp.dot(mz, wd1_ref[...], preferred_element_type=jnp.float32) + bd1_ref[...]
    h3 = jnp.maximum(h3, 0.0)                                  # ReLU
    out = jnp.dot(h3, wd2_ref[...], preferred_element_type=jnp.float32) + bd2_ref[...]
    out_ref[0] = _fold_rows_to_nodes(out, bt, d)               # (D, bt*X) lane-dense store


def _choose_batch_tile(B, D, target_rows=256):
    """Batch-tile size: aim for bt*D >= target_rows (MXU fill) but keep >= 2
    'parallel' grid steps when possible so v7x's two TensorCores both get work."""
    bt = max(1, min(B, target_rows // max(D, 1)))
    while bt > 1 and (B // bt) < 2:
        bt -= 1
    while B % bt != 0:
        bt -= 1
    return bt


def dag_gnn_forward(data, params, bt=None):
    """Full DAG_GNN forward. Returns (logits, origin_A, myA, output)."""
    B, D, X = data.shape
    adj_A = params["adj_A"]                        # raw parameter ("myA")
    H_enc = params["w1"].shape[1]
    Z = params["w2"].shape[1]
    H_dec = params["wd1"].shape[1]

    # Tiny (D,D) elementwise + prep work stays in plain JAX; XLA fuses it.
    origin_A = jnp.sinh(3.0 * adj_A)               # adj_A1
    eye = jnp.eye(D, dtype=jnp.float32)
    enc_adj = eye - origin_A.T                     # preprocess_adj_new
    # TODO(synk): general matrix inverse has no Pallas TPU equivalent; done in plain JAX.
    dec_adj = jnp.linalg.inv(eye - origin_A.T)     # preprocess_adj_new1

    if bt is None:
        bt = _choose_batch_tile(B, D)
    n_tiles = B // bt

    data2d = data.reshape(B * D, X)                # rows ordered (batch, node)
    wa_tiled = jnp.tile(params["wa"], (1, bt))     # (1, bt*Z)

    # Grid-invariant operands: constant index_map => no re-DMA across grid steps.
    # (Add `pipeline_mode=pl.Buffered(1)` here for large D to drop the 2nd buffer.)
    inv = lambda shape: pl.BlockSpec(shape, lambda t: tuple(0 for _ in shape))

    kernel = functools.partial(_dag_gnn_kernel, bt=bt, d=D)

    logits_slab, out_slab = pl.pallas_call(
        kernel,
        out_shape=(
            jax.ShapeDtypeStruct((n_tiles, D, bt * Z), jnp.float32),
            jax.ShapeDtypeStruct((n_tiles, D, bt * X), jnp.float32),
        ),
        grid_spec=pl.GridSpec(
            grid=(n_tiles,),
            in_specs=[
                pl.BlockSpec((bt * D, X), lambda t: (t, 0)),    # data tile
                inv((D, D)),                                    # enc_adj
                inv((D, D)),                                    # dec_adj
                inv((X, H_enc)),                                # w1 (pre-transposed)
                inv((1, H_enc)),                                # b1
                inv((H_enc, Z)),                                # w2
                inv((1, Z)),                                    # b2
                inv((Z, H_dec)),                                # wd1
                inv((1, H_dec)),                                # bd1
                inv((H_dec, X)),                                # wd2
                inv((1, X)),                                    # bd2
                inv((1, bt * Z)),                               # Wa (tiled)
            ],
            out_specs=[
                pl.BlockSpec((1, D, bt * Z), lambda t: (t, 0, 0)),
                pl.BlockSpec((1, D, bt * X), lambda t: (t, 0, 0)),
            ],
        ),
        compiler_params=pltpu.CompilerParams(dimension_semantics=("parallel",)),
    )(
        data2d, enc_adj, dec_adj,
        params["w1"], params["b1"], params["w2"], params["b2"],
        params["wd1"], params["bd1"], params["wd2"], params["bd2"],
        wa_tiled,
    )

    # Unpack node-major lane-dense slabs back to the module's (B, D, feat) layout.
    logits = logits_slab.reshape(n_tiles, D, bt, Z).transpose(0, 2, 1, 3).reshape(B, D, Z)
    output = out_slab.reshape(n_tiles, D, bt, X).transpose(0, 2, 1, 3).reshape(B, D, X)
    return logits, origin_A, adj_A, output


# ----------------------------------------------------------------------------
# Pure-JAX reference (mirrors the PyTorch forward)
# ----------------------------------------------------------------------------
def reference_forward(data, params):
    D = data.shape[1]
    adj_A = params["adj_A"]
    adj_A1 = jnp.sinh(3.0 * adj_A)
    eye = jnp.eye(D, dtype=jnp.float32)
    enc_adj = eye - adj_A1.T
    dec_adj = jnp.linalg.inv(eye - adj_A1.T)

    wa = params["wa"]                              # (1, Z)
    h1 = jax.nn.relu(data @ params["w1"] + params["b1"])
    z = h1 @ params["w2"] + params["b2"]
    logits = jnp.einsum("ij,bjk->bik", enc_adj, z + wa) - wa
    mat_z = jnp.einsum("ij,bjk->bik", dec_adj, logits + wa) - wa
    h3 = jax.nn.relu(mat_z @ params["wd1"] + params["bd1"])
    out = h3 @ params["wd2"] + params["bd2"]
    return logits, adj_A1, adj_A, out


# ----------------------------------------------------------------------------
# Deterministic parameter init (shapes per DAG_GNN.__init__ / MLPEncoder / MLPDecoder)
# ----------------------------------------------------------------------------
def make_params(key, D, X, Z, H_enc, H_dec):
    ks = jax.random.split(key, 8)

    def xavier(k, fan_in, fan_out):
        std = (2.0 / (fan_in + fan_out)) ** 0.5
        return std * jax.random.normal(k, (fan_in, fan_out), jnp.float32)

    return {
        # adjacency parameter (module inits zeros; small random values so the sinh /
        # inverse paths are exercised non-trivially)
        "adj_A": 0.05 * jax.random.normal(ks[0], (D, D), jnp.float32),
        # encoder fc1: Linear(X -> H_enc); stored pre-transposed (in, out)
        "w1": xavier(ks[1], X, H_enc),
        "b1": 0.01 * jax.random.normal(ks[2], (1, H_enc), jnp.float32),
        # encoder fc2: Linear(H_enc -> Z)
        "w2": xavier(ks[3], H_enc, Z),
        "b2": 0.01 * jax.random.normal(ks[4], (1, Z), jnp.float32),
        # decoder out_fc1: Linear(Z -> H_dec)
        "wd1": xavier(ks[5], Z, H_dec),
        "bd1": jnp.zeros((1, H_dec), jnp.float32),
        # decoder out_fc2: Linear(H_dec -> X)
        "wd2": xavier(ks[6], H_dec, X),
        "bd2": jnp.zeros((1, X), jnp.float32),
        # Wa: zeros(z_dims) in the module; keep zeros, shaped (1, Z)
        "wa": jnp.zeros((1, Z), jnp.float32),
    }


if __name__ == "__main__":
    # Small shapes consistent with the module:
    # batch=2, data_variable_size=8, x_dims=4, z_dims=4, encoder/decoder hidden=32
    B, D, X, Z, H_enc, H_dec = 2, 8, 4, 4, 32, 32

    key = jax.random.PRNGKey(0)
    k_data, k_par = jax.random.split(key)
    data = jax.random.normal(k_data, (B, D, X), jnp.float32)
    params = make_params(k_par, D, X, Z, H_enc, H_dec)

    logits, origin_A, myA, output = jax.jit(dag_gnn_forward)(data, params)
    jax.block_until_ready((logits, origin_A, myA, output))

    # correctness check against pure-JAX reference
    ref_logits, ref_origin_A, ref_myA, ref_out = reference_forward(data, params)
    assert jnp.allclose(logits, ref_logits, atol=1e-4, rtol=1e-4)
    assert jnp.allclose(origin_A, ref_origin_A, atol=1e-5, rtol=1e-5)
    assert jnp.allclose(myA, ref_myA)
    assert jnp.allclose(output, ref_out, atol=1e-4, rtol=1e-4)

    print("KERNEL_OK")
</pallas_src>

<mosaic_0001>
module attributes {stable_mosaic.version = 11 : i64} {
  func.func @_dag_gnn_kernel(%arg0: i32, %arg1: memref<8x4xf32, #tpu.memory_space<vmem>>, %arg2: memref<8x8xf32, #tpu.memory_space<vmem>>, %arg3: memref<8x8xf32, #tpu.memory_space<vmem>>, %arg4: memref<4x32xf32, #tpu.memory_space<vmem>>, %arg5: memref<1x32xf32, #tpu.memory_space<vmem>>, %arg6: memref<32x4xf32, #tpu.memory_space<vmem>>, %arg7: memref<1x4xf32, #tpu.memory_space<vmem>>, %arg8: memref<4x32xf32, #tpu.memory_space<vmem>>, %arg9: memref<1x32xf32, #tpu.memory_space<vmem>>, %arg10: memref<32x4xf32, #tpu.memory_space<vmem>>, %arg11: memref<1x4xf32, #tpu.memory_space<vmem>>, %arg12: memref<1x4xf32, #tpu.memory_space<vmem>>, %arg13: memref<1x8x4xf32, #tpu.memory_space<vmem>>, %arg14: memref<1x8x4xf32, #tpu.memory_space<vmem>>) attributes {dimension_semantics = [#tpu.dimension_semantics<parallel>], iteration_bounds = array<i64: 2>, scalar_prefetch = 0 : i64, scratch_operands = 0 : i64, tpu.core_type = #tpu.core_type<tc>, window_params = [{transform_indices = @transform_0, window_bounds = array<i64: 8, 4>}, {pipeline_mode = #tpu.pipeline_mode<synchronous>, transform_indices = @transform_1, window_bounds = array<i64: 8, 8>}, {pipeline_mode = #tpu.pipeline_mode<synchronous>, transform_indices = @transform_2, window_bounds = array<i64: 8, 8>}, {pipeline_mode = #tpu.pipeline_mode<synchronous>, transform_indices = @transform_3, window_bounds = array<i64: 4, 32>}, {pipeline_mode = #tpu.pipeline_mode<synchronous>, transform_indices = @transform_4, window_bounds = array<i64: 1, 32>}, {pipeline_mode = #tpu.pipeline_mode<synchronous>, transform_indices = @transform_5, window_bounds = array<i64: 32, 4>}, {pipeline_mode = #tpu.pipeline_mode<synchronous>, transform_indices = @transform_6, window_bounds = array<i64: 1, 4>}, {pipeline_mode = #tpu.pipeline_mode<synchronous>, transform_indices = @transform_7, window_bounds = array<i64: 4, 32>}, {pipeline_mode = #tpu.pipeline_mode<synchronous>, transform_indices = @transform_8, window_bounds = array<i64: 1, 32>}, {pipeline_mode = #tpu.pipeline_mode<synchronous>, transform_indices = @transform_9, window_bounds = array<i64: 32, 4>}, {pipeline_mode = #tpu.pipeline_mode<synchronous>, transform_indices = @transform_10, window_bounds = array<i64: 1, 4>}, {pipeline_mode = #tpu.pipeline_mode<synchronous>, transform_indices = @transform_11, window_bounds = array<i64: 1, 4>}, {transform_indices = @transform_12, window_bounds = array<i64: 1, 8, 4>}, {transform_indices = @transform_13, window_bounds = array<i64: 1, 8, 4>}]} {
    %c0 = arith.constant 0 : index
    %c0_0 = arith.constant 0 : index
    %0 = vector.load %arg1[%c0, %c0_0] : memref<8x4xf32, #tpu.memory_space<vmem>>, vector<8x4xf32>
    %c0_1 = arith.constant 0 : index
    %c0_2 = arith.constant 0 : index
    %1 = vector.load %arg4[%c0_1, %c0_2] : memref<4x32xf32, #tpu.memory_space<vmem>>, vector<4x32xf32>
    %cst = arith.constant dense<0.000000e+00> : vector<8x32xf32>
    %2 = tpu.matmul %0, %1, %cst {dimension_numbers = #tpu.dot_dimension_numbers<[1], [0], [0], [1], [0, 0, 1, 1], [], []>} : vector<8x4xf32>, vector<4x32xf32>, vector<8x32xf32> -> vector<8x32xf32>
    %c0_3 = arith.constant 0 : index
    %c0_4 = arith.constant 0 : index
    %3 = vector.load %arg5[%c0_3, %c0_4] : memref<1x32xf32, #tpu.memory_space<vmem>>, vector<1x32xf32>
    %4 = vector.broadcast %3 : vector<1x32xf32> to vector<8x32xf32>
    %5 = arith.addf %2, %4 : vector<8x32xf32>
    %cst_5 = arith.constant 0.000000e+00 : f32
    %6 = vector.broadcast %cst_5 : f32 to vector<8x32xf32>
    %7 = arith.maximumf %5, %6 : vector<8x32xf32>
    %c0_6 = arith.constant 0 : index
    %c0_7 = arith.constant 0 : index
    %8 = vector.load %arg6[%c0_6, %c0_7] : memref<32x4xf32, #tpu.memory_space<vmem>>, vector<32x4xf32>
    %cst_8 = arith.constant dense<0.000000e+00> : vector<8x4xf32>
    %9 = tpu.matmul %7, %8, %cst_8 {dimension_numbers = #tpu.dot_dimension_numbers<[1], [0], [0], [1], [0, 0, 1, 1], [], []>} : vector<8x32xf32>, vector<32x4xf32>, vector<8x4xf32> -> vector<8x4xf32>
    %c0_9 = arith.constant 0 : index
    %c0_10 = arith.constant 0 : index
    %10 = vector.load %arg7[%c0_9, %c0_10] : memref<1x4xf32, #tpu.memory_space<vmem>>, vector<1x4xf32>
    %11 = vector.broadcast %10 : vector<1x4xf32> to vector<8x4xf32>
    %12 = arith.addf %9, %11 : vector<8x4xf32>
    %c0_11 = arith.constant 0 : index
    %c0_12 = arith.constant 0 : index
    %13 = vector.load %arg12[%c0_11, %c0_12] : memref<1x4xf32, #tpu.memory_space<vmem>>, vector<1x4xf32>
    %c0_13 = arith.constant 0 : index
    %c0_14 = arith.constant 0 : index
    %14 = vector.load %arg2[%c0_13, %c0_14] : memref<8x8xf32, #tpu.memory_space<vmem>>, vector<8x8xf32>
    %15 = vector.broadcast %13 : vector<1x4xf32> to vector<8x4xf32>
    %16 = arith.addf %12, %15 : vector<8x4xf32>
    %cst_15 = arith.constant dense<0.000000e+00> : vector<8x4xf32>
    %17 = tpu.matmul %14, %16, %cst_15 {dimension_numbers = #tpu.dot_dimension_numbers<[1], [0], [0], [1], [0, 0, 1, 1], [], []>} : vector<8x8xf32>, vector<8x4xf32>, vector<8x4xf32> -> vector<8x4xf32>
    %18 = vector.broadcast %13 : vector<1x4xf32> to vector<8x4xf32>
    %19 = arith.subf %17, %18 : vector<8x4xf32>
    %c0_16 = arith.constant 0 : index
    %c0_17 = arith.constant 0 : index
    %c0_18 = arith.constant 0 : index
    %20 = vector.load %arg13[%c0_16, %c0_17, %c0_18] : memref<1x8x4xf32, #tpu.memory_space<vmem>>, vector<1x8x4xf32>
    %21 = vector.shape_cast %20 : vector<1x8x4xf32> to vector<8x4xf32>
    %22 = vector.shape_cast %19 : vector<8x4xf32> to vector<1x8x4xf32>
    tpu.vector_store %arg13[%c0_16, %c0_17, %c0_18], %22 {strides = array<i32>} : memref<1x8x4xf32, #tpu.memory_space<vmem>>, vector<1x8x4xf32>,
    %c0_19 = arith.constant 0 : index
    %c0_20 = arith.constant 0 : index
    %23 = vector.load %arg3[%c0_19, %c0_20] : memref<8x8xf32, #tpu.memory_space<vmem>>, vector<8x8xf32>
    %24 = vector.broadcast %13 : vector<1x4xf32> to vector<8x4xf32>
    %25 = arith.addf %19, %24 : vector<8x4xf32>
    %cst_21 = arith.constant dense<0.000000e+00> : vector<8x4xf32>
    %26 = tpu.matmul %23, %25, %cst_21 {dimension_numbers = #tpu.dot_dimension_numbers<[1], [0], [0], [1], [0, 0, 1, 1], [], []>} : vector<8x8xf32>, vector<8x4xf32>, vector<8x4xf32> -> vector<8x4xf32>
    %27 = vector.broadcast %13 : vector<1x4xf32> to vector<8x4xf32>
    %28 = arith.subf %26, %27 : vector<8x4xf32>
    %c0_22 = arith.constant 0 : index
    %c0_23 = arith.constant 0 : index
    %29 = vector.load %arg8[%c0_22, %c0_23] : memref<4x32xf32, #tpu.memory_space<vmem>>, vector<4x32xf32>
    %cst_24 = arith.constant dense<0.000000e+00> : vector<8x32xf32>
    %30 = tpu.matmul %28, %29, %cst_24 {dimension_numbers = #tpu.dot_dimension_numbers<[1], [0], [0], [1], [0, 0, 1, 1], [], []>} : vector<8x4xf32>, vector<4x32xf32>, vector<8x32xf32> -> vector<8x32xf32>
    %c0_25 = arith.constant 0 : index
    %c0_26 = arith.constant 0 : index
    %31 = vector.load %arg9[%c0_25, %c0_26] : memref<1x32xf32, #tpu.memory_space<vmem>>, vector<1x32xf32>
    %32 = vector.broadcast %31 : vector<1x32xf32> to vector<8x32xf32>
    %33 = arith.addf %30, %32 : vector<8x32xf32>
    %cst_27 = arith.constant 0.000000e+00 : f32
    %34 = vector.broadcast %cst_27 : f32 to vector<8x32xf32>
    %35 = arith.maximumf %33, %34 : vector<8x32xf32>
    %c0_28 = arith.constant 0 : index
    %c0_29 = arith.constant 0 : index
    %36 = vector.load %arg10[%c0_28, %c0_29] : memref<32x4xf32, #tpu.memory_space<vmem>>, vector<32x4xf32>
    %cst_30 = arith.constant dense<0.000000e+00> : vector<8x4xf32>
    %37 = tpu.matmul %35, %36, %cst_30 {dimension_numbers = #tpu.dot_dimension_numbers<[1], [0], [0], [1], [0, 0, 1, 1], [], []>} : vector<8x32xf32>, vector<32x4xf32>, vector<8x4xf32> -> vector<8x4xf32>
    %c0_31 = arith.constant 0 : index
    %c0_32 = arith.constant 0 : index
    %38 = vector.load %arg11[%c0_31, %c0_32] : memref<1x4xf32, #tpu.memory_space<vmem>>, vector<1x4xf32>
    %39 = vector.broadcast %38 : vector<1x4xf32> to vector<8x4xf32>
    %40 = arith.addf %37, %39 : vector<8x4xf32>
    %c0_33 = arith.constant 0 : index
    %c0_34 = arith.constant 0 : index
    %c0_35 = arith.constant 0 : index
    %41 = vector.load %arg14[%c0_33, %c0_34, %c0_35] : memref<1x8x4xf32, #tpu.memory_space<vmem>>, vector<1x8x4xf32>
    %42 = vector.shape_cast %41 : vector<1x8x4xf32> to vector<8x4xf32>
    %43 = vector.shape_cast %40 : vector<8x4xf32> to vector<1x8x4xf32>
    tpu.vector_store %arg14[%c0_33, %c0_34, %c0_35], %43 {strides = array<i32>} : memref<1x8x4xf32, #tpu.memory_space<vmem>>, vector<1x8x4xf32>,
    return
  }
  func.func @transform_0(%arg0: i32) -> (i32, i32) {
    %c0_i32 = arith.constant 0 : i32
    %c0_i32_0 = arith.constant 0 : i32
    return %arg0, %c0_i32 : i32, i32
  }
  func.func @transform_1(%arg0: i32) -> (i32, i32) {
    %c0_i32 = arith.constant 0 : i32
    %c0_i32_0 = arith.constant 0 : i32
    %c0_i32_1 = arith.constant 0 : i32
    return %c0_i32, %c0_i32_0 : i32, i32
  }
  func.func @transform_2(%arg0: i32) -> (i32, i32) {
    %c0_i32 = arith.constant 0 : i32
    %c0_i32_0 = arith.constant 0 : i32
    %c0_i32_1 = arith.constant 0 : i32
    return %c0_i32, %c0_i32_0 : i32, i32
  }
  func.func @transform_3(%arg0: i32) -> (i32, i32) {
    %c0_i32 = arith.constant 0 : i32
    %c0_i32_0 = arith.constant 0 : i32
    %c0_i32_1 = arith.constant 0 : i32
    return %c0_i32, %c0_i32_0 : i32, i32
  }
  func.func @transform_4(%arg0: i32) -> (i32, i32) {
    %c0_i32 = arith.constant 0 : i32
    %c0_i32_0 = arith.constant 0 : i32
    %c0_i32_1 = arith.constant 0 : i32
    return %c0_i32, %c0_i32_0 : i32, i32
  }
  func.func @transform_5(%arg0: i32) -> (i32, i32) {
    %c0_i32 = arith.constant 0 : i32
    %c0_i32_0 = arith.constant 0 : i32
    %c0_i32_1 = arith.constant 0 : i32
    return %c0_i32, %c0_i32_0 : i32, i32
  }
  func.func @transform_6(%arg0: i32) -> (i32, i32) {
    %c0_i32 = arith.constant 0 : i32
    %c0_i32_0 = arith.constant 0 : i32
    %c0_i32_1 = arith.constant 0 : i32
    return %c0_i32, %c0_i32_0 : i32, i32
  }
  func.func @transform_7(%arg0: i32) -> (i32, i32) {
    %c0_i32 = arith.constant 0 : i32
    %c0_i32_0 = arith.constant 0 : i32
    %c0_i32_1 = arith.constant 0 : i32
    return %c0_i32, %c0_i32_0 : i32, i32
  }
  func.func @transform_8(%arg0: i32) -> (i32, i32) {
    %c0_i32 = arith.constant 0 : i32
    %c0_i32_0 = arith.constant 0 : i32
    %c0_i32_1 = arith.constant 0 : i32
    return %c0_i32, %c0_i32_0 : i32, i32
  }
  func.func @transform_9(%arg0: i32) -> (i32, i32) {
    %c0_i32 = arith.constant 0 : i32
    %c0_i32_0 = arith.constant 0 : i32
    %c0_i32_1 = arith.constant 0 : i32
    return %c0_i32, %c0_i32_0 : i32, i32
  }
  func.func @transform_10(%arg0: i32) -> (i32, i32) {
    %c0_i32 = arith.constant 0 : i32
    %c0_i32_0 = arith.constant 0 : i32
    %c0_i32_1 = arith.constant 0 : i32
    return %c0_i32, %c0_i32_0 : i32, i32
  }
  func.func @transform_11(%arg0: i32) -> (i32, i32) {
    %c0_i32 = arith.constant 0 : i32
    %c0_i32_0 = arith.constant 0 : i32
    %c0_i32_1 = arith.constant 0 : i32
    return %c0_i32, %c0_i32_0 : i32, i32
  }
  func.func @transform_12(%arg0: i32) -> (i32, i32, i32) {
    %c0_i32 = arith.constant 0 : i32
    %c0_i32_0 = arith.constant 0 : i32
    %c0_i32_1 = arith.constant 0 : i32
    return %arg0, %c0_i32, %c0_i32_0 : i32, i32, i32
  }
  func.func @transform_13(%arg0: i32) -> (i32, i32, i32) {
    %c0_i32 = arith.constant 0 : i32
    %c0_i32_0 = arith.constant 0 : i32
    %c0_i32_1 = arith.constant 0 : i32
    return %arg0, %c0_i32, %c0_i32_0 : i32, i32, i32
  }
}

</mosaic_0001>

<llo_original>
// kernel: custom-call.11
$region0: #{custom-call.11}
  %s0 = inlined_call_operand.vmem [shape: f32[8,8], index: 0, kind: input, shape index: {}]
  %s1 = inlined_call_operand.vmem [shape: f32[8,8], index: 1, kind: output, shape index: {0}]
  %s2 = inlined_call_operand.hbm [shape: s32[8], index: 2, kind: output, shape index: {1}]
  %s3 = inlined_call_operand.vmem [shape: s32[8], index: 3, kind: output, shape index: {2}]
  %4 = xla_tuple %s1, %s2, %s3
  $region1: #{custom-call.11} parent=0
    #allocation0 [shape = 'u8[4096]{0}', space=vmem, size = 0x1000, scoped, tag = 'operand span for operand 0']
    #allocation1 [shape = 'u8[4096]{0}', space=vmem, size = 0x1000, scoped, tag = 'operand span for operand 1']
    #allocation2 [shape = 'u8[4096]{0}', space=vmem, size = 0x1000, scoped, tag = 'operand span for operand 2']
    #allocation3 [shape = 'u8[512]{0}', space=vmem, size = 0x400, scoped, tag = 'packed  for operand 2']
    #allocation4 [shape = 's32[1]{0}', space=sflag, size = 0x4, scoped, tag = 'scoped memory for custom-call.11']
    #allocation5 [shape = 'u8[4096]{0}', space=vmem, size = 0x1000, scoped, tag = 'operand span for operand 3']
    #allocation6 [shape = 'u8[512]{0}', space=vmem, size = 0x400, scoped, tag = 'packed  for operand 3']
    #allocation7 [shape = 's32[8,128]{1,0}', space=vmem, size = 0x1000, scoped, tag = 'scratch for permutations']
    %5 = vsyncpa [#allocation4], 0
    %p7 = scmp.gt.s32.totalorder 8, 0
    // Predicated region
    $region2: #{custom-call.11} parent=1 // pred_check
      %p8 = pneg %p7
    $region3: #{custom-call.11} parent=1 // pred_check_branch
      %10 = sbr.rel (%p8) target = $region5
    $region4: #{custom-call.11} parent=1 // pred_region
      %s11 = sshra.s32 8, 3
      %p12 = scmp.gt.s32.totalorder %s11, 0
      // Predicated region
      $region6: #{custom-call.11} parent=4 // pred_check
        %p13 = pneg %p12
      $region7: #{custom-call.11} parent=4 // pred_check_branch
        %15 = sbr.rel (%p13) target = $region9
      $region8: #{custom-call.11} parent=4 // pred_region
        %s16 = ssub.s32 %s11, 1
        %s17 = smul.u32 %s16, 128
        %s18 = sshra.s32 %s17, 4
        %s19 = scalar_lea.vmem %s0, %s18
        %v20 = vld [vmem:[%s0] sm:$0xff]
        // While loop
        $region10: #{custom-call.11} parent=8 // loop_pre_header
          _
        $region11: #{custom-call.11} parent=8 // loop_header
          %s21 = sphi %s0, %s43
          %s22 = sphi [#allocation0], %s44
          %v23 = vphi %v20, %v45
          %s24 = ssub.s32 %s19, 64
          %p25 = scmp.gt.s32.totalorder %s21, %s24
        $region12: #{custom-call.11} parent=8 // loop_header_branch
          %27 = sbr.rel (%p25) target = $region16
        $region13: #{custom-call.11} parent=8 // loop_body
          %28 = vst [vmem:[%s22] sm:$0xff] %v23
          %v29 = vld [vmem:[%s21 + $0x8] sm:$0xff]
          %30 = vst [vmem:[%s22 + $0x8] sm:$0xff] %v29
          %v31 = vld [vmem:[%s21 + $0x10] sm:$0xff]
          %32 = vst [vmem:[%s22 + $0x10] sm:$0xff] %v31
          %v33 = vld [vmem:[%s21 + $0x18] sm:$0xff]
          %34 = vst [vmem:[%s22 + $0x18] sm:$0xff] %v33
          %v35 = vld [vmem:[%s21 + $0x20] sm:$0xff]
          %36 = vst [vmem:[%s22 + $0x20] sm:$0xff] %v35
          %v37 = vld [vmem:[%s21 + $0x28] sm:$0xff]
          %38 = vst [vmem:[%s22 + $0x28] sm:$0xff] %v37
          %v39 = vld [vmem:[%s21 + $0x30] sm:$0xff]
          %40 = vst [vmem:[%s22 + $0x30] sm:$0xff] %v39
          %v41 = vld [vmem:[%s21 + $0x38] sm:$0xff]
          %42 = vst [vmem:[%s22 + $0x38] sm:$0xff] %v41
        $region14: #{custom-call.11} parent=8 // loop_footer
          %s43 = scalar_lea.vmem %s21, 64
          %s44 = scalar_lea.vmem %s22, 64
          %v45 = vld [vmem:[%s21 + $0x40] sm:$0xff]
        $region15: #{custom-call.11} parent=8 // loop_footer_branch
          %46 = sbr.rel target = $region11
        $region16: #{custom-call.11} parent=8 // loop_exit
          _
        // While loop
        $region17: #{custom-call.11} parent=8 // loop_pre_header
          _
        $region18: #{custom-call.11} parent=8 // loop_header
          %s47 = sphi %s21, %s55
          %s48 = sphi %s22, %s56
          %v49 = vphi %v23, %v49
          %p50 = scmp.gt.s32.totalorder %s47, %s19
        $region19: #{custom-call.11} parent=8 // loop_header_branch
          %52 = sbr.rel (%p50) target = $region23
        $region20: #{custom-call.11} parent=8 // loop_body
          %v53 = vld [vmem:[%s47] sm:$0xff]
          %54 = vst [vmem:[%s48] sm:$0xff] %v53
        $region21: #{custom-call.11} parent=8 // loop_footer
          %s55 = scalar_lea.vmem %s47, 8
          %s56 = scalar_lea.vmem %s48, 8
        $region22: #{custom-call.11} parent=8 // loop_footer_branch
          %57 = sbr.rel target = $region18
        $region23: #{custom-call.11} parent=8 // loop_exit
          _
      $region9: #{custom-call.11} parent=4 // pred_fallthru
        _
      %s58 = sand.u32 8, 7
      %s59 = sshllo.u32 0, %s58
      %s60 = smul.u32 %s11, 128
      %s61 = sshra.s32 %s60, 4
      %s62 = scalar_lea.vmem [#allocation0], %s61
      %s63 = smul.u32 %s11, 128
      %s64 = sshra.s32 %s63, 4
      %s65 = scalar_lea.vmem %s0, %s64
      %v66 = vld [vmem:[%s65] sm:%s59]
      %67 = vst [vmem:[%s62] sm:%s59] %v66
    $region5: #{custom-call.11} parent=1 // pred_fallthru
      _
    %v68 = vld [vmem:[#allocation0] sm:$0xff]
    %69 = vst [vmem:[#allocation1] sm:$0xff] %v68
    %70 = vst [vmem:[#allocation2] sm:$0x1] 0
    %v71 = vlaneseq
    %v72 = vshrl.u32 %v71, 7
    %v73 = vmov %v72
    %75 = vst [vmem:[#allocation7] sm:$0xff] %v73
    loop: start=0, step=1, limit=8
    $region25: #{custom-call.11} parent=1 // loop_pre_header
      _
    $region26: #{custom-call.11} parent=1 // loop_header
      %s77 = sphi 0, %s81
      %p78 = scmp.ge.s32.totalorder %s77, 8
    $region27: #{custom-call.11} parent=1 // loop_header_branch
      %80 = sbr.rel (%p78) target = $region31
    $region28: #{custom-call.11} parent=1 // loop_body
      %v82 = vstv %s77
      %v83 = vlaneseq
      %v84 = vshrl.u32 %v83, 7
      %v85 = vmov %v84
      %v86 = vld [vmem:[#allocation1] sm:$0xff]
      %v87 = vand.u32 2147483647, %v86
      %v89 = vstv %s77
      %vm90 = vcmp.ge.s32.totalorder %v85, %v89
      %vm91 = vcmp.lt.s32.totalorder %v85, 8
      %vm92 = vmand %vm90, %vm91
      %vm93 = vcmp.lt.f32.partialorder -inf, %v87
      %vm94 = vmand %vm92, %vm93
      %v95 = vsel %vm94, %v85, %v82
      %v96 = vsel %vm94, %v87, -inf
      %v97 = vrot.slane %v96, 1
      %v98 = vrot.slane %v95, 1
      %vm99 = vcmp.ge.f32.partialorder %v97, %v96
      %v100 = vsel %vm99, %v97, %v96
      %v101 = vsel %vm99, %v98, %v95
      %v102 = vrot.slane %v97, 1
      %v103 = vrot.slane %v98, 1
      %vm104 = vcmp.ge.f32.partialorder %v102, %v100
      %v105 = vsel %vm104, %v102, %v100
      %v106 = vsel %vm104, %v103, %v101
      %v107 = vrot.slane %v102, 1
      %v108 = vrot.slane %v103, 1
      %vm109 = vcmp.ge.f32.partialorder %v107, %v105
      %v110 = vsel %vm109, %v107, %v105
      %v111 = vsel %vm109, %v108, %v106
      %v112 = vrot.slane %v107, 1
      %v113 = vrot.slane %v108, 1
      %vm114 = vcmp.ge.f32.partialorder %v112, %v110
      %v115 = vsel %vm114, %v112, %v110
      %v116 = vsel %vm114, %v113, %v111
      %v117 = vrot.slane %v112, 1
      %v118 = vrot.slane %v113, 1
      %vm119 = vcmp.ge.f32.partialorder %v117, %v115
      %v120 = vsel %vm119, %v117, %v115
      %v121 = vsel %vm119, %v118, %v116
      %v122 = vrot.slane %v117, 1
      %v123 = vrot.slane %v118, 1
      %vm124 = vcmp.ge.f32.partialorder %v122, %v120
      %v125 = vsel %vm124, %v122, %v120
      %v126 = vsel %vm124, %v123, %v121
      %v127 = vrot.slane %v122, 1
      %v128 = vrot.slane %v123, 1
      %vm129 = vcmp.ge.f32.partialorder %v127, %v125
      %v130 = vsel %vm129, %v127, %v125
      %v131 = vsel %vm129, %v128, %v126
      %s132 = ssub.s32 128, %s77
      %133 = vrot.lane.b32.xlu0 %v131, %s132
      %v134 = vpop.permute.xlu0 %133
      %s135 = vtos %v134
      %v136 = vstv %s77
      %v137 = vlaneseq
      %v138 = vand.u32 %v137, 127
      %vm139 = vcmp.eq.s32.totalorder %v138, %v136
      %v140 = vstv %s135
      %v141 = vld [vmem:[#allocation2] ss:$0 sm:$0xff]
      %v142 = vsel %vm139, %v140, %v141
      %143 = vst [vmem:[#allocation2] sm:$0x1] %v142
      %s144 = scalar_lea.vmem [#allocation1], %s77
      %s145 = scalar_lea.vmem [#allocation1], %s135
      %v146 = vld [vmem:[%s144] ss:$0 sm:$0xff]
      %v147 = vld [vmem:[%s145] ss:$0 sm:$0xff]
      %148 = vst [vmem:[%s145] sm:$0x1] %v146
      %149 = vst [vmem:[%s144] sm:$0x1] %v147
      %s150 = scalar_lea.vmem [#allocation7], %s77
      %s151 = scalar_lea.vmem [#allocation7], %s135
      %v152 = vld [vmem:[%s150] ss:$0 sm:$0xff]
      %v153 = vld [vmem:[%s151] ss:$0 sm:$0xff]
      %154 = vst [vmem:[%s151] sm:$0x1] %v152
      %155 = vst [vmem:[%s150] sm:$0x1] %v153
      %vm156 = vcmp.ne.f32.partialorder %v147, 0.0
      %vm157 = vmand %vm139, %vm156
      %v158 = vsel %vm157, %v147, 1.0
      %v159 = vlaneseq
      %v160 = vand.u32 %v159, 127
      %v161 = vstv %s77
      %vm162 = vcmp.gt.s32.totalorder %v160, %v161
      %v163 = vsel %vm162, %v147, 0.0
      %v164 = vlaneseq
      %v165 = vshrl.u32 %v164, 7
      %v166 = vmov %v165
      %v167 = vld [vmem:[#allocation1] sm:$0xff]
      %v169 = vstv %s77
      %vm170 = vcmp.gt.s32.totalorder %v166, %v169
      %v171 = vsel %vm170, %v158, 1.0
      %v172 = vrcp.pop %v171
      %v173 = vmul.f32 %v167, %v172
      %vm174 = vmand %vm170, %vm139
      %v175 = vsel %vm174, %v173, 0.0
      %176 = vadd.xlane.f32.xlu0 %v175
      %v177 = vpop.xlane.xlu0 %176
      %v178 = vmul.f32 %v177, %v163
      %v179 = vsub.f32 %v173, %v178
      %180 = vst [vmem:[#allocation1] sm:$0xff] %v179
    $region29: #{custom-call.11} parent=1 // loop_footer
      %s81 = sadd.s32 1, %s77
    $region30: #{custom-call.11} parent=1 // loop_footer_branch
      %76 = sbr.rel target = $region26
    $region31: #{custom-call.11} parent=1 // loop_exit
      _
    %v181 = vld [vmem:[#allocation7] sm:$0xff]
    %s182 = scalar_lea.vmem [#allocation7], 8
    %s183 = scalar_lea.vmem [#allocation7], 16
    %s184 = scalar_lea.vmem [#allocation7], 24
    %s185 = scalar_lea.vmem [#allocation7], 32
    %s186 = scalar_lea.vmem [#allocation7], 40
    %s187 = scalar_lea.vmem [#allocation7], 48
    %s188 = scalar_lea.vmem [#allocation7], 56
    %s189 = scalar_lea.vmem [#allocation7], 64
    %s190 = scalar_lea.vmem [#allocation7], 72
    %s191 = scalar_lea.vmem [#allocation7], 80
    %s192 = scalar_lea.vmem [#allocation7], 88
    %s193 = scalar_lea.vmem [#allocation7], 96
    %s194 = scalar_lea.vmem [#allocation7], 104
    %s195 = scalar_lea.vmem [#allocation7], 112
    %s196 = scalar_lea.vmem [#allocation7], 120
    %197 = vxpose.xlu0.b32.start [1/16] %v181, 128
    %198 = vxpose.xlu0.b32.cont [2/16] 0, 128
    %199 = vxpose.xlu0.b32.cont [3/16] 0, 128
    %200 = vxpose.xlu0.b32.cont [4/16] 0, 128
    %201 = vxpose.xlu0.b32.cont [5/16] 0, 128
    %202 = vxpose.xlu0.b32.cont [6/16] 0, 128
    %203 = vxpose.xlu0.b32.cont [7/16] 0, 128
    %204 = vxpose.xlu0.b32.cont [8/16] 0, 128
    %205 = vxpose.xlu0.b32.cont [9/16] 0, 128
    %206 = vxpose.xlu0.b32.cont [10/16] 0, 128
    %207 = vxpose.xlu0.b32.cont [11/16] 0, 128
    %208 = vxpose.xlu0.b32.cont [12/16] 0, 128
    %209 = vxpose.xlu0.b32.cont [13/16] 0, 128
    %210 = vxpose.xlu0.b32.cont [14/16] 0, 128
    %211 = vxpose.xlu0.b32.cont [15/16] 0, 128
    %212 = vxpose.xlu0.b32.end [16/16] 0, 128
    %v213 = vpop.trf.xlu0
    %v214 = vpop.trf.xlu0
    %v215 = vpop.trf.xlu0
    %v216 = vpop.trf.xlu0
    %v217 = vpop.trf.xlu0
    %v218 = vpop.trf.xlu0
    %v219 = vpop.trf.xlu0
    %v220 = vpop.trf.xlu0
    %v221 = vpop.trf.xlu0
    %v222 = vpop.trf.xlu0
    %v223 = vpop.trf.xlu0
    %v224 = vpop.trf.xlu0
    %v225 = vpop.trf.xlu0
    %v226 = vpop.trf.xlu0
    %v227 = vpop.trf.xlu0
    %v228 = vpop.trf.xlu0
    %229 = vst [vmem:[#allocation5] sm:$0x1] %v213
    %s231 = sshllo.u32 0, 1
    %v233 = vld [vmem:[#allocation2] sm:%s231]
    %s234 = sshllo.u32 0, 1
    %235 = vst [vmem:[#allocation3] sm:%s234] %v233
    %s237 = sshllo.u32 0, 1
    %v239 = vld [vmem:[#allocation5] sm:%s237]
    %s240 = sshllo.u32 0, 1
    %241 = vst [vmem:[#allocation6] sm:%s240] %v239
    %p243 = scmp.gt.s32.totalorder 8, 0
    // Predicated region
    $region32: #{custom-call.11} parent=1 // pred_check
      %p244 = pneg %p243
    $region33: #{custom-call.11} parent=1 // pred_check_branch
      %246 = sbr.rel (%p244) target = $region35
    $region34: #{custom-call.11} parent=1 // pred_region
      %s247 = sshra.s32 8, 3
      %p248 = scmp.gt.s32.totalorder %s247, 0
      // Predicated region
      $region36: #{custom-call.11} parent=34 // pred_check
        %p249 = pneg %p248
      $region37: #{custom-call.11} parent=34 // pred_check_branch
        %251 = sbr.rel (%p249) target = $region39
      $region38: #{custom-call.11} parent=34 // pred_region
        %s252 = ssub.s32 %s247, 1
        %s253 = smul.u32 %s252, 128
        %s254 = sshra.s32 %s253, 4
        %s255 = scalar_lea.vmem [#allocation1], %s254
        %v256 = vld [vmem:[#allocation1] sm:$0xff]
        // While loop
        $region40: #{custom-call.11} parent=38 // loop_pre_header
          _
        $region41: #{custom-call.11} parent=38 // loop_header
          %s257 = sphi [#allocation1], %s279
          %s258 = sphi %s1, %s280
          %v259 = vphi %v256, %v281
          %s260 = ssub.s32 %s255, 64
          %p261 = scmp.gt.s32.totalorder %s257, %s260
        $region42: #{custom-call.11} parent=38 // loop_header_branch
          %263 = sbr.rel (%p261) target = $region46
        $region43: #{custom-call.11} parent=38 // loop_body
          %264 = vst [vmem:[%s258] sm:$0xff] %v259
          %v265 = vld [vmem:[%s257 + $0x8] sm:$0xff]
          %266 = vst [vmem:[%s258 + $0x8] sm:$0xff] %v265
          %v267 = vld [vmem:[%s257 + $0x10] sm:$0xff]
          %268 = vst [vmem:[%s258 + $0x10] sm:$0xff] %v267
          %v269 = vld [vmem:[%s257 + $0x18] sm:$0xff]
          %270 = vst [vmem:[%s258 + $0x18] sm:$0xff] %v269
          %v271 = vld [vmem:[%s257 + $0x20] sm:$0xff]
          %272 = vst [vmem:[%s258 + $0x20] sm:$0xff] %v271
          %v273 = vld [vmem:[%s257 + $0x28] sm:$0xff]
          %274 = vst [vmem:[%s258 + $0x28] sm:$0xff] %v273
          %v275 = vld [vmem:[%s257 + $0x30] sm:$0xff]
          %276 = vst [vmem:[%s258 + $0x30] sm:$0xff] %v275
          %v277 = vld [vmem:[%s257 + $0x38] sm:$0xff]
          %278 = vst [vmem:[%s258 + $0x38] sm:$0xff] %v277
        $region44: #{custom-call.11} parent=38 // loop_footer
          %s279 = scalar_lea.vmem %s257, 64
          %s280 = scalar_lea.vmem %s258, 64
          %v281 = vld [vmem:[%s257 + $0x40] sm:$0xff]
        $region45: #{custom-call.11} parent=38 // loop_footer_branch
          %282 = sbr.rel target = $region41
        $region46: #{custom-call.11} parent=38 // loop_exit
          _
        // While loop
        $region47: #{custom-call.11} parent=38 // loop_pre_header
          _
        $region48: #{custom-call.11} parent=38 // loop_header
          %s283 = sphi %s257, %s291
          %s284 = sphi %s258, %s292
          %v285 = vphi %v259, %v285
          %p286 = scmp.gt.s32.totalorder %s283, %s255
        $region49: #{custom-call.11} parent=38 // loop_header_branch
          %288 = sbr.rel (%p286) target = $region53
        $region50: #{custom-call.11} parent=38 // loop_body
          %v289 = vld [vmem:[%s283] sm:$0xff]
          %290 = vst [vmem:[%s284] sm:$0xff] %v289
        $region51: #{custom-call.11} parent=38 // loop_footer
          %s291 = scalar_lea.vmem %s283, 8
          %s292 = scalar_lea.vmem %s284, 8
        $region52: #{custom-call.11} parent=38 // loop_footer_branch
          %293 = sbr.rel target = $region48
        $region53: #{custom-call.11} parent=38 // loop_exit
          _
      $region39: #{custom-call.11} parent=34 // pred_fallthru
        _
      %s294 = sand.u32 8, 7
      %s295 = sshllo.u32 0, %s294
      %s296 = smul.u32 %s247, 128
      %s297 = sshra.s32 %s296, 4
      %s298 = scalar_lea.vmem %s1, %s297
      %s299 = smul.u32 %s247, 128
      %s300 = sshra.s32 %s299, 4
      %s301 = scalar_lea.vmem [#allocation1], %s300
      %v302 = vld [vmem:[%s301] sm:%s295]
      %303 = vst [vmem:[%s298] sm:%s295] %v302
    $region35: #{custom-call.11} parent=1 // pred_fallthru
      _
    // Predicated region
    $region54: #{custom-call.11} parent=1 // pred_check
      _
    $region55: #{custom-call.11} parent=1 // pred_check_branch
      %305 = sbr.rel (0) target = $region57
    $region56: #{custom-call.11} parent=1 // pred_region
      %s307 = ssub.s32 16, 16
      %308 = vsyncadd [#allocation4], %s307
      %s309 = sshll.u32 [#allocation3], 4
      %s310 = int_to_ptr.vmem [resolvable:$true] %s309
      %312 = dma.vmem_to_hbm [thread:$0]  %s310, 16, %s2, [#allocation4]
    $region57: #{custom-call.11} parent=1 // pred_fallthru
      _
    // Predicated region
    $region58: #{custom-call.11} parent=1 // pred_check
      _
    $region59: #{custom-call.11} parent=1 // pred_check_branch
      %314 = sbr.rel (0) target = $region61
    $region60: #{custom-call.11} parent=1 // pred_region
      %p316 = scmp.gt.s32.totalorder 1, 0
      // Predicated region
      $region62: #{custom-call.11} parent=60 // pred_check
        %p317 = pneg %p316
      $region63: #{custom-call.11} parent=60 // pred_check_branch
        %319 = sbr.rel (%p317) target = $region65
      $region64: #{custom-call.11} parent=60 // pred_region
        %s320 = sshra.s32 1, 3
        %p321 = scmp.gt.s32.totalorder %s320, 0
        // Predicated region
        $region66: #{custom-call.11} parent=64 // pred_check
          %p322 = pneg %p321
        $region67: #{custom-call.11} parent=64 // pred_check_branch
          %324 = sbr.rel (%p322) target = $region69
        $region68: #{custom-call.11} parent=64 // pred_region
          %s325 = ssub.s32 %s320, 1
          %s326 = smul.u32 %s325, 128
          %s327 = sshra.s32 %s326, 4
          %s328 = scalar_lea.vmem [#allocation6], %s327
          %v329 = vld [vmem:[#allocation6] sm:$0xff]
          // While loop
          $region70: #{custom-call.11} parent=68 // loop_pre_header
            _
          $region71: #{custom-call.11} parent=68 // loop_header
            %s330 = sphi [#allocation6], %s352
            %s331 = sphi %s3, %s353
            %v332 = vphi %v329, %v354
            %s333 = ssub.s32 %s328, 64
            %p334 = scmp.gt.s32.totalorder %s330, %s333
          $region72: #{custom-call.11} parent=68 // loop_header_branch
            %336 = sbr.rel (%p334) target = $region76
          $region73: #{custom-call.11} parent=68 // loop_body
            %337 = vst [vmem:[%s331] sm:$0xff] %v332
            %v338 = vld [vmem:[%s330 + $0x8] sm:$0xff]
            %339 = vst [vmem:[%s331 + $0x8] sm:$0xff] %v338
            %v340 = vld [vmem:[%s330 + $0x10] sm:$0xff]
            %341 = vst [vmem:[%s331 + $0x10] sm:$0xff] %v340
            %v342 = vld [vmem:[%s330 + $0x18] sm:$0xff]
            %343 = vst [vmem:[%s331 + $0x18] sm:$0xff] %v342
            %v344 = vld [vmem:[%s330 + $0x20] sm:$0xff]
            %345 = vst [vmem:[%s331 + $0x20] sm:$0xff] %v344
            %v346 = vld [vmem:[%s330 + $0x28] sm:$0xff]
            %347 = vst [vmem:[%s331 + $0x28] sm:$0xff] %v346
            %v348 = vld [vmem:[%s330 + $0x30] sm:$0xff]
            %349 = vst [vmem:[%s331 + $0x30] sm:$0xff] %v348
            %v350 = vld [vmem:[%s330 + $0x38] sm:$0xff]
            %351 = vst [vmem:[%s331 + $0x38] sm:$0xff] %v350
          $region74: #{custom-call.11} parent=68 // loop_footer
            %s352 = scalar_lea.vmem %s330, 64
            %s353 = scalar_lea.vmem %s331, 64
            %v354 = vld [vmem:[%s330 + $0x40] sm:$0xff]
          $region75: #{custom-call.11} parent=68 // loop_footer_branch
            %355 = sbr.rel target = $region71
          $region76: #{custom-call.11} parent=68 // loop_exit
            _
          // While loop
          $region77: #{custom-call.11} parent=68 // loop_pre_header
            _
          $region78: #{custom-call.11} parent=68 // loop_header
            %s356 = sphi %s330, %s364
            %s357 = sphi %s331, %s365
            %v358 = vphi %v332, %v358
            %p359 = scmp.gt.s32.totalorder %s356, %s328
          $region79: #{custom-call.11} parent=68 // loop_header_branch
            %361 = sbr.rel (%p359) target = $region83
          $region80: #{custom-call.11} parent=68 // loop_body
            %v362 = vld [vmem:[%s356] sm:$0xff]
            %363 = vst [vmem:[%s357] sm:$0xff] %v362
          $region81: #{custom-call.11} parent=68 // loop_footer
            %s364 = scalar_lea.vmem %s356, 8
            %s365 = scalar_lea.vmem %s357, 8
          $region82: #{custom-call.11} parent=68 // loop_footer_branch
            %366 = sbr.rel target = $region78
          $region83: #{custom-call.11} parent=68 // loop_exit
            _
        $region69: #{custom-call.11} parent=64 // pred_fallthru
          _
        %s367 = sand.u32 1, 7
        %s368 = sshllo.u32 0, %s367
        %s369 = smul.u32 %s320, 128
        %s370 = sshra.s32 %s369, 4
        %s371 = scalar_lea.vmem %s3, %s370
        %s372 = smul.u32 %s320, 128
        %s373 = sshra.s32 %s372, 4
        %s374 = scalar_lea.vmem [#allocation6], %s373
        %v375 = vld [vmem:[%s374] sm:%s368]
        %376 = vst [vmem:[%s371] sm:%s368] %v375
      $region65: #{custom-call.11} parent=60 // pred_fallthru
        _
    $region61: #{custom-call.11} parent=1 // pred_fallthru
      _
    // Predicated region
    $region84: #{custom-call.11} parent=1 // pred_check
      _
    $region85: #{custom-call.11} parent=1 // pred_check_branch
      %378 = sbr.rel (0) target = $region87
    $region86: #{custom-call.11} parent=1 // pred_region
      %379 = dma.done [#allocation4], 16
    $region87: #{custom-call.11} parent=1 // pred_fallthru
      _
    // Predicated region
    $region88: #{custom-call.11} parent=1 // pred_check
      _
    $region89: #{custom-call.11} parent=1 // pred_check_branch
      %381 = sbr.rel (0) target = $region91
    $region90: #{custom-call.11} parent=1 // pred_region
      _
    $region91: #{custom-call.11} parent=1 // pred_fallthru
      _
    %382 = vsyncpa [#allocation4], 1

// kernel: custom-call.13
$region0: #{custom-call.13}
  %s0 = inlined_call_operand.vmem [shape: f32[1,8,8], index: 0, kind: input, shape index: {}]
  %s1 = inlined_call_operand.vmem [shape: f32[1,8,8], index: 1, kind: output, shape index: {}]
  $region1: #{custom-call.13} parent=0
    #allocation0 [shape = 'u8[4096]{0}', space=vmem, size = 0x1000, scoped, tag = 'operand span for operand 0']
    #allocation1 [shape = 'u8[4096]{0}', space=vmem, size = 0x1000, scoped, tag = 'operand span for operand 1']
    #allocation2 [shape = 'f32[8,8]{1,0}', space=vmem, size = 0x1000, scoped, tag = 'rescaled input a']
    // Predicated region
    $region2: #{custom-call.13} parent=1 // pred_check
      _
    $region3: #{custom-call.13} parent=1 // pred_check_branch
      %3 = sbr.rel (0) target = $region5
    $region4: #{custom-call.13} parent=1 // pred_region
      // Predicated region
      $region6: #{custom-call.13} parent=4 // pred_check
        _
      $region7: #{custom-call.13} parent=4 // pred_check_branch
        %5 = sbr.rel (0) target = $region9
      $region8: #{custom-call.13} parent=4 // pred_region
        // Predicated region
        $region21: #{custom-call.13} parent=8 // pred_check
          _
        $region22: #{custom-call.13} parent=8 // pred_check_branch
          %20 = sbr.rel (0) target = $region24
        $region23: #{custom-call.13} parent=8 // pred_region
          loop: start=0, step=1, limit=1
          $region25: #{custom-call.13} parent=23 // loop_pre_header
            _
          $region26: #{custom-call.13} parent=23 // loop_header
            %s22 = sphi 0, %s26
            %p23 = scmp.ge.s32.totalorder %s22, 1
            %s27 = sphi %s0, %s0
            %s28 = sphi [#allocation0], [#allocation0]
          $region27: #{custom-call.13} parent=23 // loop_header_branch
            %25 = sbr.rel (%p23) target = $region31
          $region28: #{custom-call.13} parent=23 // loop_body
            %v29 = vld [vmem:[%s27] sm:$0xff]
            %30 = vst [vmem:[%s28] sm:$0xff] %v29
          $region29: #{custom-call.13} parent=23 // loop_footer
            %s26 = sadd.s32 1, %s22
          $region30: #{custom-call.13} parent=23 // loop_footer_branch
            %21 = sbr.rel target = $region26
          $region31: #{custom-call.13} parent=23 // loop_exit
            _
        $region24: #{custom-call.13} parent=8 // pred_fallthru
          _
        // Predicated region
        $region32: #{custom-call.13} parent=8 // pred_check
          _
        $region33: #{custom-call.13} parent=8 // pred_check_branch
          %32 = sbr.rel target = $region35
        $region34: #{custom-call.13} parent=8 // pred_region
          _
        $region35: #{custom-call.13} parent=8 // pred_fallthru
          _
      $region9: #{custom-call.13} parent=4 // pred_fallthru
        _
      // Predicated region
      $region10: #{custom-call.13} parent=4 // pred_check
        _
      $region11: #{custom-call.13} parent=4 // pred_check_branch
        %7 = sbr.rel target = $region13
      $region12: #{custom-call.13} parent=4 // pred_region
        loop: start=0, step=1, limit=1
        $region14: #{custom-call.13} parent=12 // loop_pre_header
          _
        $region15: #{custom-call.13} parent=12 // loop_header
          %s10 = sphi 0, %s14
          %p11 = scmp.ge.s32.totalorder %s10, 1
          %s15 = sphi %s0, %s0
          %s16 = sphi [#allocation0], [#allocation0]
        $region16: #{custom-call.13} parent=12 // loop_header_branch
          %13 = sbr.rel (%p11) target = $region20
        $region17: #{custom-call.13} parent=12 // loop_body
          %v17 = vld [vmem:[%s15] sm:$0xff]
          %18 = vst [vmem:[%s16] sm:$0xff] %v17
        $region18: #{custom-call.13} parent=12 // loop_footer
          %s14 = sadd.s32 1, %s10
        $region19: #{custom-call.13} parent=12 // loop_footer_branch
          %9 = sbr.rel target = $region15
        $region20: #{custom-call.13} parent=12 // loop_exit
          _
      $region13: #{custom-call.13} parent=4 // pred_fallthru
        _
    $region5: #{custom-call.13} parent=1 // pred_fallthru
      _
    %33 = vnop
    %v34 = vlaneseq
    %v35 = vand.u32 %v34, 127
    %vm36 = vcmp.lt.s32.totalorder %v35, 8
    %v37 = vlaneseq
    %v38 = vshrl.u32 %v37, 7
    %vm40 = vcmp.eq.s32.totalorder %v38, %v35
    %v41 = vld [vmem:[#allocation0] sm:$0xff]
    %v42 = vsel %vm40, %v41, 0.0
    %43 = vadd.xlane.f32.xlu0 %v42
    %v44 = vpop.xlane.xlu0 %43
    %vm45 = vcmp.ge.s32.totalorder %v38, %v35
    %vm46 = vmand %vm45, %vm36
    %v47 = vsel %vm46, %v41, 0.0
    %v48 = vrcp.pop %v44
    %v49 = vmul.f32 %v47, %v48
    %50 = vst [vmem:[#allocation2] sm:$0xff] %v49
    %v51 = vlaneseq
    %v52 = vand.u32 %v51, 127
    %v53 = vlaneseq
    %v54 = vshrl.u32 %v53, 7
    %vm56 = vcmp.eq.s32.totalorder %v52, %v54
    %v57 = vlaneseq
    %v58 = vand.u32 %v57, 127
    %vm59 = vcmp.eq.s32.totalorder %v58, 0
    %v60 = vsel %vm59, 1.0, -1.0
    %v61 = vsel %vm56, %v60, 0.0
    %s62 = scalar_lea.vmem [#allocation2], 1
    %v63 = vld [vmem:[%s62] ss:$0 sm:$0xff]
    %v64 = vxor.u32 %v63, 2147483648
    %v65 = vlaneseq
    %v66 = vand.u32 %v65, 127
    %vm67 = vcmp.eq.s32.totalorder %v66, 1
    %v68 = vmul.f32 %v64, %v61
    %69 = vadd.xlane.f32.xlu0 %v68
    %v70 = vpop.xlane.xlu0 %69
    %v71 = vsel %vm67, %v70, %v61
    %s72 = scalar_lea.vmem [#allocation2], 2
    %v73 = vld [vmem:[%s72] ss:$0 sm:$0xff]
    %v74 = vxor.u32 %v73, 2147483648
    %v75 = vlaneseq
    %v76 = vand.u32 %v75, 127
    %vm77 = vcmp.eq.s32.totalorder %v76, 2
    %v78 = vmul.f32 %v74, %v71
    %79 = vadd.xlane.f32.xlu0 %v78
    %v80 = vpop.xlane.xlu0 %79
    %v81 = vsel %vm77, %v80, %v71
    %s82 = scalar_lea.vmem [#allocation2], 3
    %v83 = vld [vmem:[%s82] ss:$0 sm:$0xff]
    %v84 = vxor.u32 %v83, 2147483648
    %v85 = vlaneseq
    %v86 = vand.u32 %v85, 127
    %vm87 = vcmp.eq.s32.totalorder %v86, 3
    %v88 = vmul.f32 %v84, %v81
    %89 = vadd.xlane.f32.xlu0 %v88
    %v90 = vpop.xlane.xlu0 %89
    %v91 = vsel %vm87, %v90, %v81
    %s92 = scalar_lea.vmem [#allocation2], 4
    %v93 = vld [vmem:[%s92] ss:$0 sm:$0xff]
    %v94 = vxor.u32 %v93, 2147483648
    %v95 = vlaneseq
    %v96 = vand.u32 %v95, 127
    %vm97 = vcmp.eq.s32.totalorder %v96, 4
    %v98 = vmul.f32 %v94, %v91
    %99 = vadd.xlane.f32.xlu0 %v98
    %v100 = vpop.xlane.xlu0 %99
    %v101 = vsel %vm97, %v100, %v91
    %s102 = scalar_lea.vmem [#allocation2], 5
    %v103 = vld [vmem:[%s102] ss:$0 sm:$0xff]
    %v104 = vxor.u32 %v103, 2147483648
    %v105 = vlaneseq
    %v106 = vand.u32 %v105, 127
    %vm107 = vcmp.eq.s32.totalorder %v106, 5
    %v108 = vmul.f32 %v104, %v101
    %109 = vadd.xlane.f32.xlu0 %v108
    %v110 = vpop.xlane.xlu0 %109
    %v111 = vsel %vm107, %v110, %v101
    %s112 = scalar_lea.vmem [#allocation2], 6
    %v113 = vld [vmem:[%s112] ss:$0 sm:$0xff]
    %v114 = vxor.u32 %v113, 2147483648
    %v115 = vlaneseq
    %v116 = vand.u32 %v115, 127
    %vm117 = vcmp.eq.s32.totalorder %v116, 6
    %v118 = vmul.f32 %v114, %v111
    %119 = vadd.xlane.f32.xlu0 %v118
    %v120 = vpop.xlane.xlu0 %119
    %v121 = vsel %vm117, %v120, %v111
    %s122 = scalar_lea.vmem [#allocation2], 7
    %v123 = vld [vmem:[%s122] ss:$0 sm:$0xff]
    %v124 = vxor.u32 %v123, 2147483648
    %v125 = vlaneseq
    %v126 = vand.u32 %v125, 127
    %vm127 = vcmp.eq.s32.totalorder %v126, 7
    %v128 = vmul.f32 %v124, %v121
    %129 = vadd.xlane.f32.xlu0 %v128
    %v130 = vpop.xlane.xlu0 %129
    %v131 = vsel %vm127, %v130, %v121
    %v132 = vrcp.pop %v44
    %v133 = vmul.f32 %v131, %v132
    %vm134 = vweird.f32 %v44
    %v135 = vsel %vm134, %v131, %v133
    %136 = vst [vmem:[#allocation1] sm:$0xff] %v135
    // Predicated region
    $region36: #{custom-call.13} parent=1 // pred_check
      _
    $region37: #{custom-call.13} parent=1 // pred_check_branch
      %138 = sbr.rel (0) target = $region39
    $region38: #{custom-call.13} parent=1 // pred_region
      // Predicated region
      $region40: #{custom-call.13} parent=38 // pred_check
        _
      $region41: #{custom-call.13} parent=38 // pred_check_branch
        %140 = sbr.rel (0) target = $region43
      $region42: #{custom-call.13} parent=38 // pred_region
        // Predicated region
        $region55: #{custom-call.13} parent=42 // pred_check
          _
        $region56: #{custom-call.13} parent=42 // pred_check_branch
          %155 = sbr.rel (0) target = $region58
        $region57: #{custom-call.13} parent=42 // pred_region
          loop: start=0, step=1, limit=1
          $region59: #{custom-call.13} parent=57 // loop_pre_header
            _
          $region60: #{custom-call.13} parent=57 // loop_header
            %s157 = sphi 0, %s161
            %p158 = scmp.ge.s32.totalorder %s157, 1
            %s162 = sphi [#allocation1], [#allocation1]
            %s163 = sphi %s1, %s1
          $region61: #{custom-call.13} parent=57 // loop_header_branch
            %160 = sbr.rel (%p158) target = $region65
          $region62: #{custom-call.13} parent=57 // loop_body
            %v164 = vld [vmem:[%s162] sm:$0xff]
            %165 = vst [vmem:[%s163] sm:$0xff] %v164
          $region63: #{custom-call.13} parent=57 // loop_footer
            %s161 = sadd.s32 1, %s157
          $region64: #{custom-call.13} parent=57 // loop_footer_branch
            %156 = sbr.rel target = $region60
          $region65: #{custom-call.13} parent=57 // loop_exit
            _
        $region58: #{custom-call.13} parent=42 // pred_fallthru
          _
        // Predicated region
        $region66: #{custom-call.13} parent=42 // pred_check
          _
        $region67: #{custom-call.13} parent=42 // pred_check_branch
          %167 = sbr.rel target = $region69
        $region68: #{custom-call.13} parent=42 // pred_region
          _
        $region69: #{custom-call.13} parent=42 // pred_fallthru
          _
      $region43: #{custom-call.13} parent=38 // pred_fallthru
        _
      // Predicated region
      $region44: #{custom-call.13} parent=38 // pred_check
        _
      $region45: #{custom-call.13} parent=38 // pred_check_branch
        %142 = sbr.rel target = $region47
      $region46: #{custom-call.13} parent=38 // pred_region
        loop: start=0, step=1, limit=1
        $region48: #{custom-call.13} parent=46 // loop_pre_header
          _
        $region49: #{custom-call.13} parent=46 // loop_header
          %s145 = sphi 0, %s149
          %p146 = scmp.ge.s32.totalorder %s145, 1
          %s150 = sphi [#allocation1], [#allocation1]
          %s151 = sphi %s1, %s1
        $region50: #{custom-call.13} parent=46 // loop_header_branch
          %148 = sbr.rel (%p146) target = $region54
        $region51: #{custom-call.13} parent=46 // loop_body
          %v152 = vld [vmem:[%s150] sm:$0xff]
          %153 = vst [vmem:[%s151] sm:$0xff] %v152
        $region52: #{custom-call.13} parent=46 // loop_footer
          %s149 = sadd.s32 1, %s145
        $region53: #{custom-call.13} parent=46 // loop_footer_branch
          %144 = sbr.rel target = $region49
        $region54: #{custom-call.13} parent=46 // loop_exit
          _
      $region47: #{custom-call.13} parent=38 // pred_fallthru
        _
    $region39: #{custom-call.13} parent=1 // pred_fallthru
      _
    %168 = vnop

// kernel: custom-call.12
$region0: #{custom-call.12}
  %s0 = inlined_call_operand.vmem [shape: f32[1,8,8], index: 0, kind: input, shape index: {}]
  %s1 = inlined_call_operand.vmem [shape: f32[1,8,8], index: 1, kind: output, shape index: {}]
  $region1: #{custom-call.12} parent=0
    #allocation0 [shape = 'u8[4096]{0}', space=vmem, size = 0x1000, scoped, tag = 'operand span for operand 0']
    #allocation1 [shape = 'u8[4096]{0}', space=vmem, size = 0x1000, scoped, tag = 'operand span for operand 1']
    #allocation2 [shape = 'f32[8,8]{1,0}', space=vmem, size = 0x1000, scoped, tag = 'rescaled input a']
    // Predicated region
    $region2: #{custom-call.12} parent=1 // pred_check
      _
    $region3: #{custom-call.12} parent=1 // pred_check_branch
      %3 = sbr.rel (0) target = $region5
    $region4: #{custom-call.12} parent=1 // pred_region
      // Predicated region
      $region6: #{custom-call.12} parent=4 // pred_check
        _
      $region7: #{custom-call.12} parent=4 // pred_check_branch
        %5 = sbr.rel (0) target = $region9
      $region8: #{custom-call.12} parent=4 // pred_region
        // Predicated region
        $region21: #{custom-call.12} parent=8 // pred_check
          _
        $region22: #{custom-call.12} parent=8 // pred_check_branch
          %20 = sbr.rel (0) target = $region24
        $region23: #{custom-call.12} parent=8 // pred_region
          loop: start=0, step=1, limit=1
          $region25: #{custom-call.12} parent=23 // loop_pre_header
            _
          $region26: #{custom-call.12} parent=23 // loop_header
            %s22 = sphi 0, %s26
            %p23 = scmp.ge.s32.totalorder %s22, 1
            %s27 = sphi %s0, %s0
            %s28 = sphi [#allocation0], [#allocation0]
          $region27: #{custom-call.12} parent=23 // loop_header_branch
            %25 = sbr.rel (%p23) target = $region31
          $region28: #{custom-call.12} parent=23 // loop_body
            %v29 = vld [vmem:[%s27] sm:$0xff]
            %30 = vst [vmem:[%s28] sm:$0xff] %v29
          $region29: #{custom-call.12} parent=23 // loop_footer
            %s26 = sadd.s32 1, %s22
          $region30: #{custom-call.12} parent=23 // loop_footer_branch
            %21 = sbr.rel target = $region26
          $region31: #{custom-call.12} parent=23 // loop_exit
            _
        $region24: #{custom-call.12} parent=8 // pred_fallthru
          _
        // Predicated region
        $region32: #{custom-call.12} parent=8 // pred_check
          _
        $region33: #{custom-call.12} parent=8 // pred_check_branch
          %32 = sbr.rel target = $region35
        $region34: #{custom-call.12} parent=8 // pred_region
          _
        $region35: #{custom-call.12} parent=8 // pred_fallthru
          _
      $region9: #{custom-call.12} parent=4 // pred_fallthru
        _
      // Predicated region
      $region10: #{custom-call.12} parent=4 // pred_check
        _
      $region11: #{custom-call.12} parent=4 // pred_check_branch
        %7 = sbr.rel target = $region13
      $region12: #{custom-call.12} parent=4 // pred_region
        loop: start=0, step=1, limit=1
        $region14: #{custom-call.12} parent=12 // loop_pre_header
          _
        $region15: #{custom-call.12} parent=12 // loop_header
          %s10 = sphi 0, %s14
          %p11 = scmp.ge.s32.totalorder %s10, 1
          %s15 = sphi %s0, %s0
          %s16 = sphi [#allocation0], [#allocation0]
        $region16: #{custom-call.12} parent=12 // loop_header_branch
          %13 = sbr.rel (%p11) target = $region20
        $region17: #{custom-call.12} parent=12 // loop_body
          %v17 = vld [vmem:[%s15] sm:$0xff]
          %18 = vst [vmem:[%s16] sm:$0xff] %v17
        $region18: #{custom-call.12} parent=12 // loop_footer
          %s14 = sadd.s32 1, %s10
        $region19: #{custom-call.12} parent=12 // loop_footer_branch
          %9 = sbr.rel target = $region15
        $region20: #{custom-call.12} parent=12 // loop_exit
          _
      $region13: #{custom-call.12} parent=4 // pred_fallthru
        _
    $region5: #{custom-call.12} parent=1 // pred_fallthru
      _
    %33 = vnop
    %v34 = vlaneseq
    %v35 = vand.u32 %v34, 127
    %vm36 = vcmp.lt.s32.totalorder %v35, 8
    %v37 = vlaneseq
    %v38 = vshrl.u32 %v37, 7
    %vm40 = vcmp.eq.s32.totalorder %v38, %v35
    %v41 = vld [vmem:[#allocation0] sm:$0xff]
    %v42 = vsel %vm40, %v41, 0.0
    %43 = vadd.xlane.f32.xlu0 %v42
    %v44 = vpop.xlane.xlu0 %43
    %vm45 = vcmp.le.s32.totalorder %v38, %v35
    %vm46 = vmand %vm45, %vm36
    %v47 = vsel %vm46, %v41, 0.0
    %v48 = vrcp.pop %v44
    %v49 = vmul.f32 %v47, %v48
    %50 = vst [vmem:[#allocation2] sm:$0xff] %v49
    %v51 = vlaneseq
    %v52 = vand.u32 %v51, 127
    %v53 = vlaneseq
    %v54 = vshrl.u32 %v53, 7
    %vm56 = vcmp.eq.s32.totalorder %v52, %v54
    %v57 = vlaneseq
    %v58 = vand.u32 %v57, 127
    %vm59 = vcmp.eq.s32.totalorder %v58, 7
    %v60 = vsel %vm59, 1.0, -1.0
    %v61 = vsel %vm56, %v60, 0.0
    %s62 = scalar_lea.vmem [#allocation2], 6
    %v63 = vld [vmem:[%s62] ss:$0 sm:$0xff]
    %v64 = vxor.u32 %v63, 2147483648
    %v65 = vlaneseq
    %v66 = vand.u32 %v65, 127
    %vm67 = vcmp.eq.s32.totalorder %v66, 6
    %v68 = vmul.f32 %v64, %v61
    %69 = vadd.xlane.f32.xlu0 %v68
    %v70 = vpop.xlane.xlu0 %69
    %v71 = vsel %vm67, %v70, %v61
    %s72 = scalar_lea.vmem [#allocation2], 5
    %v73 = vld [vmem:[%s72] ss:$0 sm:$0xff]
    %v74 = vxor.u32 %v73, 2147483648
    %v75 = vlaneseq
    %v76 = vand.u32 %v75, 127
    %vm77 = vcmp.eq.s32.totalorder %v76, 5
    %v78 = vmul.f32 %v74, %v71
    %79 = vadd.xlane.f32.xlu0 %v78
    %v80 = vpop.xlane.xlu0 %79
    %v81 = vsel %vm77, %v80, %v71
    %s82 = scalar_lea.vmem [#allocation2], 4
    %v83 = vld [vmem:[%s82] ss:$0 sm:$0xff]
    %v84 = vxor.u32 %v83, 2147483648
    %v85 = vlaneseq
    %v86 = vand.u32 %v85, 127
    %vm87 = vcmp.eq.s32.totalorder %v86, 4
    %v88 = vmul.f32 %v84, %v81
    %89 = vadd.xlane.f32.xlu0 %v88
    %v90 = vpop.xlane.xlu0 %89
    %v91 = vsel %vm87, %v90, %v81
    %s92 = scalar_lea.vmem [#allocation2], 3
    %v93 = vld [vmem:[%s92] ss:$0 sm:$0xff]
    %v94 = vxor.u32 %v93, 2147483648
    %v95 = vlaneseq
    %v96 = vand.u32 %v95, 127
    %vm97 = vcmp.eq.s32.totalorder %v96, 3
    %v98 = vmul.f32 %v94, %v91
    %99 = vadd.xlane.f32.xlu0 %v98
    %v100 = vpop.xlane.xlu0 %99
    %v101 = vsel %vm97, %v100, %v91
    %s102 = scalar_lea.vmem [#allocation2], 2
    %v103 = vld [vmem:[%s102] ss:$0 sm:$0xff]
    %v104 = vxor.u32 %v103, 2147483648
    %v105 = vlaneseq
    %v106 = vand.u32 %v105, 127
    %vm107 = vcmp.eq.s32.totalorder %v106, 2
    %v108 = vmul.f32 %v104, %v101
    %109 = vadd.xlane.f32.xlu0 %v108
    %v110 = vpop.xlane.xlu0 %109
    %v111 = vsel %vm107, %v110, %v101
    %s112 = scalar_lea.vmem [#allocation2], 1
    %v113 = vld [vmem:[%s112] ss:$0 sm:$0xff]
    %v114 = vxor.u32 %v113, 2147483648
    %v115 = vlaneseq
    %v116 = vand.u32 %v115, 127
    %vm117 = vcmp.eq.s32.totalorder %v116, 1
    %v118 = vmul.f32 %v114, %v111
    %119 = vadd.xlane.f32.xlu0 %v118
    %v120 = vpop.xlane.xlu0 %119
    %v121 = vsel %vm117, %v120, %v111
    %v122 = vld [vmem:[#allocation2] ss:$0 sm:$0xff]
    %v123 = vxor.u32 %v122, 2147483648
    %v124 = vlaneseq
    %v125 = vand.u32 %v124, 127
    %vm126 = vcmp.eq.s32.totalorder %v125, 0
    %v127 = vmul.f32 %v123, %v121
    %128 = vadd.xlane.f32.xlu0 %v127
    %v129 = vpop.xlane.xlu0 %128
    %v130 = vsel %vm126, %v129, %v121
    %v131 = vrcp.pop %v44
    %v132 = vmul.f32 %v130, %v131
    %vm133 = vweird.f32 %v44
    %v134 = vsel %vm133, %v130, %v132
    %135 = vst [vmem:[#allocation1] sm:$0xff] %v134
    // Predicated region
    $region36: #{custom-call.12} parent=1 // pred_check
      _
    $region37: #{custom-call.12} parent=1 // pred_check_branch
      %137 = sbr.rel (0) target = $region39
    $region38: #{custom-call.12} parent=1 // pred_region
      // Predicated region
      $region40: #{custom-call.12} parent=38 // pred_check
        _
      $region41: #{custom-call.12} parent=38 // pred_check_branch
        %139 = sbr.rel (0) target = $region43
      $region42: #{custom-call.12} parent=38 // pred_region
        // Predicated region
        $region55: #{custom-call.12} parent=42 // pred_check
          _
        $region56: #{custom-call.12} parent=42 // pred_check_branch
          %154 = sbr.rel (0) target = $region58
        $region57: #{custom-call.12} parent=42 // pred_region
          loop: start=0, step=1, limit=1
          $region59: #{custom-call.12} parent=57 // loop_pre_header
            _
          $region60: #{custom-call.12} parent=57 // loop_header
            %s156 = sphi 0, %s160
            %p157 = scmp.ge.s32.totalorder %s156, 1
            %s161 = sphi [#allocation1], [#allocation1]
            %s162 = sphi %s1, %s1
          $region61: #{custom-call.12} parent=57 // loop_header_branch
            %159 = sbr.rel (%p157) target = $region65
          $region62: #{custom-call.12} parent=57 // loop_body
            %v163 = vld [vmem:[%s161] sm:$0xff]
            %164 = vst [vmem:[%s162] sm:$0xff] %v163
          $region63: #{custom-call.12} parent=57 // loop_footer
            %s160 = sadd.s32 1, %s156
          $region64: #{custom-call.12} parent=57 // loop_footer_branch
            %155 = sbr.rel target = $region60
          $region65: #{custom-call.12} parent=57 // loop_exit
            _
        $region58: #{custom-call.12} parent=42 // pred_fallthru
          _
        // Predicated region
        $region66: #{custom-call.12} parent=42 // pred_check
          _
        $region67: #{custom-call.12} parent=42 // pred_check_branch
          %166 = sbr.rel target = $region69
        $region68: #{custom-call.12} parent=42 // pred_region
          _
        $region69: #{custom-call.12} parent=42 // pred_fallthru
          _
      $region43: #{custom-call.12} parent=38 // pred_fallthru
        _
      // Predicated region
      $region44: #{custom-call.12} parent=38 // pred_check
        _
      $region45: #{custom-call.12} parent=38 // pred_check_branch
        %141 = sbr.rel target = $region47
      $region46: #{custom-call.12} parent=38 // pred_region
        loop: start=0, step=1, limit=1
        $region48: #{custom-call.12} parent=46 // loop_pre_header
          _
        $region49: #{custom-call.12} parent=46 // loop_header
          %s144 = sphi 0, %s148
          %p145 = scmp.ge.s32.totalorder %s144, 1
          %s149 = sphi [#allocation1], [#allocation1]
          %s150 = sphi %s1, %s1
        $region50: #{custom-call.12} parent=46 // loop_header_branch
          %147 = sbr.rel (%p145) target = $region54
        $region51: #{custom-call.12} parent=46 // loop_body
          %v151 = vld [vmem:[%s149] sm:$0xff]
          %152 = vst [vmem:[%s150] sm:$0xff] %v151
        $region52: #{custom-call.12} parent=46 // loop_footer
          %s148 = sadd.s32 1, %s144
        $region53: #{custom-call.12} parent=46 // loop_footer_branch
          %143 = sbr.rel target = $region49
        $region54: #{custom-call.12} parent=46 // loop_exit
          _
      $region47: #{custom-call.12} parent=38 // pred_fallthru
        _
    $region39: #{custom-call.12} parent=1 // pred_fallthru
      _
    %167 = vnop

// kernel: dag_gnn_forward.1
$region0: #{dag_gnn_forward.1}
  #allocation0 [shape = 'u32[]', space=smem, size = 0x4, offset = 0x4, fixed_abs, tag = 'smem constant byte address 0x4 - core index']
  #allocation1 [shape = 'u32[144,128]{1,0:T(1,128)}', space=vmem, size = 0x12000, scoped, tag = 'internal scratch']
  %s0 = inlined_call_operand.vmem [shape: f32[16,4], index: 0, kind: input, shape index: {}]
  %s1 = inlined_call_operand.vmem [shape: f32[8,8], index: 1, kind: input, shape index: {}]
  %s2 = inlined_call_operand.vmem [shape: f32[8,8], index: 2, kind: input, shape index: {}]
  %s3 = inlined_call_operand.vmem [shape: f32[4,32], index: 3, kind: input, shape index: {}]
  %s4 = inlined_call_operand.vmem [shape: f32[1,32], index: 4, kind: input, shape index: {}]
  %s5 = inlined_call_operand.vmem [shape: f32[32,4], index: 5, kind: input, shape index: {}]
  %s6 = inlined_call_operand.vmem [shape: f32[1,4], index: 6, kind: input, shape index: {}]
  %s7 = inlined_call_operand.vmem [shape: f32[4,32], index: 7, kind: input, shape index: {}]
  %s8 = inlined_call_operand.vmem [shape: f32[1,32], index: 8, kind: input, shape index: {}]
  %s9 = inlined_call_operand.vmem [shape: f32[32,4], index: 9, kind: input, shape index: {}]
  %s10 = inlined_call_operand.vmem [shape: f32[1,4], index: 10, kind: input, shape index: {}]
  %s11 = inlined_call_operand.vmem [shape: f32[1,4], index: 11, kind: input, shape index: {}]
  %s12 = inlined_call_operand.vmem [shape: f32[2,8,4], index: 12, kind: output, shape index: {0}]
  %s13 = inlined_call_operand.vmem [shape: f32[2,8,4], index: 13, kind: output, shape index: {1}]
  %14 = xla_tuple %s12, %s13
  %s15 = sld [smem:[#allocation0]]
  $region89: #{dag_gnn_forward.1} parent=0
    _
  %s17 = ssub.s32 1, %s15
  %s18 = scalar_select 0, %s17, %s15
  loop: start=0, step=1, limit=4
  $region2: #{dag_gnn_forward.1} parent=0 // loop_pre_header
    _
  $region3: #{dag_gnn_forward.1} parent=0 // loop_header
    %s20 = sphi 0, %s24
    %p21 = scmp.ge.s32.totalorder %s20, 4
    %s30 = sphi 0, %s32
    %s33 = sphi 0, %s30
    %s34 = sphi 0, %s33
    %s50 = sphi 0, %s34
    %s54 = sphi 0, %s54
    %s56 = sphi 0, %s54
    %s57 = sphi 0, %s56
    %s71 = sphi 0, %s57
    %s75 = sphi 0, %s75
    %s77 = sphi 0, %s75
    %s78 = sphi 0, %s77
    %s92 = sphi 0, %s78
    %s96 = sphi 0, %s96
    %s98 = sphi 0, %s96
    %s99 = sphi 0, %s98
    %s113 = sphi 0, %s99
    %s117 = sphi 0, %s117
    %s119 = sphi 0, %s117
    %s120 = sphi 0, %s119
    %s134 = sphi 0, %s120
    %s138 = sphi 0, %s138
    %s140 = sphi 0, %s138
    %s141 = sphi 0, %s140
    %s155 = sphi 0, %s141
    %s159 = sphi 0, %s159
    %s161 = sphi 0, %s159
    %s162 = sphi 0, %s161
    %s176 = sphi 0, %s162
    %s180 = sphi 0, %s180
    %s182 = sphi 0, %s180
    %s183 = sphi 0, %s182
    %s197 = sphi 0, %s183
    %s201 = sphi 0, %s201
    %s203 = sphi 0, %s201
    %s204 = sphi 0, %s203
    %s218 = sphi 0, %s204
    %s222 = sphi 0, %s222
    %s224 = sphi 0, %s222
    %s225 = sphi 0, %s224
    %s239 = sphi 0, %s225
    %s243 = sphi 0, %s243
    %s245 = sphi 0, %s243
    %s246 = sphi 0, %s245
    %s260 = sphi 0, %s246
    %s264 = sphi 0, %s264
    %s266 = sphi 0, %s264
    %s267 = sphi 0, %s266
    %s281 = sphi 0, %s267
    %s287 = sphi 0, %s289
    %s290 = sphi 0, %s287
    %s291 = sphi 0, %s290
    %s307 = sphi 0, %s291
    %s313 = sphi 0, %s315
    %s316 = sphi 0, %s313
    %s317 = sphi 0, %s316
    %s333 = sphi 0, %s317
  $region4: #{dag_gnn_forward.1} parent=0 // loop_header_branch
    %23 = sbr.rel (%p21) target = $region8
  $region5: #{dag_gnn_forward.1} parent=0 // loop_body
    %s25 = ssub.s32 %s20, 1
    %s26 = ssub.s32 %s20, 2
    %s27 = sadd.s32 %s20, 1
    %s28 = ssub.s32 %s20, %s27
    %p29 = scmp.eq.s32.totalorder %s28, 0
    %s31 = sadd.s32 %s30, 1
    %s32 = scalar_select %p29, %s30, %s31
    %p35 = pneg %p29
    %p36 = scmp.eq.s32.totalorder %s20, 1
    %p37 = por %p35, %p36
    %p38 = scmp.ne.s32.totalorder %s30, %s33
    %p39 = scmp.eq.s32.totalorder %s20, 0
    %p40 = por %p38, %p39
    %p41 = scmp.ne.s32.totalorder %s30, %s33
    %p42 = scmp.eq.s32.totalorder %s25, 1
    %p43 = por %p41, %p42
    %p44 = scmp.ne.s32.totalorder %s33, %s34
    %p45 = scmp.eq.s32.totalorder %s25, 0
    %p46 = por %p44, %p45
    %p47 = scmp.ne.s32.totalorder %s33, %s34
    %p48 = scmp.eq.s32.totalorder %s26, 1
    %p49 = por %p47, %p48
    %p51 = scmp.ne.s32.totalorder %s34, %s50
    %p52 = scmp.eq.s32.totalorder %s26, 0
    %p53 = por %p51, %p52
    %s55 = sadd.s32 %s54, 1
    %p58 = scmp.eq.s32.totalorder %s20, 1
    %p59 = scmp.ne.s32.totalorder %s54, %s56
    %p60 = scmp.eq.s32.totalorder %s20, 0
    %p61 = por %p59, %p60
    %p62 = scmp.ne.s32.totalorder %s54, %s56
    %p63 = scmp.eq.s32.totalorder %s25, 1
    %p64 = por %p62, %p63
    %p65 = scmp.ne.s32.totalorder %s56, %s57
    %p66 = scmp.eq.s32.totalorder %s25, 0
    %p67 = por %p65, %p66
    %p68 = scmp.ne.s32.totalorder %s56, %s57
    %p69 = scmp.eq.s32.totalorder %s26, 1
    %p70 = por %p68, %p69
    %p72 = scmp.ne.s32.totalorder %s57, %s71
    %p73 = scmp.eq.s32.totalorder %s26, 0
    %p74 = por %p72, %p73
    %s76 = sadd.s32 %s75, 1
    %p79 = scmp.eq.s32.totalorder %s20, 1
    %p80 = scmp.ne.s32.totalorder %s75, %s77
    %p81 = scmp.eq.s32.totalorder %s20, 0
    %p82 = por %p80, %p81
    %p83 = scmp.ne.s32.totalorder %s75, %s77
    %p84 = scmp.eq.s32.totalorder %s25, 1
    %p85 = por %p83, %p84
    %p86 = scmp.ne.s32.totalorder %s77, %s78
    %p87 = scmp.eq.s32.totalorder %s25, 0
    %p88 = por %p86, %p87
    %p89 = scmp.ne.s32.totalorder %s77, %s78
    %p90 = scmp.eq.s32.totalorder %s26, 1
    %p91 = por %p89, %p90
    %p93 = scmp.ne.s32.totalorder %s78, %s92
    %p94 = scmp.eq.s32.totalorder %s26, 0
    %p95 = por %p93, %p94
    %s97 = sadd.s32 %s96, 1
    %p100 = scmp.eq.s32.totalorder %s20, 1
    %p101 = scmp.ne.s32.totalorder %s96, %s98
    %p102 = scmp.eq.s32.totalorder %s20, 0
    %p103 = por %p101, %p102
    %p104 = scmp.ne.s32.totalorder %s96, %s98
    %p105 = scmp.eq.s32.totalorder %s25, 1
    %p106 = por %p104, %p105
    %p107 = scmp.ne.s32.totalorder %s98, %s99
    %p108 = scmp.eq.s32.totalorder %s25, 0
    %p109 = por %p107, %p108
    %p110 = scmp.ne.s32.totalorder %s98, %s99
    %p111 = scmp.eq.s32.totalorder %s26, 1
    %p112 = por %p110, %p111
    %p114 = scmp.ne.s32.totalorder %s99, %s113
    %p115 = scmp.eq.s32.totalorder %s26, 0
    %p116 = por %p114, %p115
    %s118 = sadd.s32 %s117, 1
    %p121 = scmp.eq.s32.totalorder %s20, 1
    %p122 = scmp.ne.s32.totalorder %s117, %s119
    %p123 = scmp.eq.s32.totalorder %s20, 0
    %p124 = por %p122, %p123
    %p125 = scmp.ne.s32.totalorder %s117, %s119
    %p126 = scmp.eq.s32.totalorder %s25, 1
    %p127 = por %p125, %p126
    %p128 = scmp.ne.s32.totalorder %s119, %s120
    %p129 = scmp.eq.s32.totalorder %s25, 0
    %p130 = por %p128, %p129
    %p131 = scmp.ne.s32.totalorder %s119, %s120
    %p132 = scmp.eq.s32.totalorder %s26, 1
    %p133 = por %p131, %p132
    %p135 = scmp.ne.s32.totalorder %s120, %s134
    %p136 = scmp.eq.s32.totalorder %s26, 0
    %p137 = por %p135, %p136
    %s139 = sadd.s32 %s138, 1
    %p142 = scmp.eq.s32.totalorder %s20, 1
    %p143 = scmp.ne.s32.totalorder %s138, %s140
    %p144 = scmp.eq.s32.totalorder %s20, 0
    %p145 = por %p143, %p144
    %p146 = scmp.ne.s32.totalorder %s138, %s140
    %p147 = scmp.eq.s32.totalorder %s25, 1
    %p148 = por %p146, %p147
    %p149 = scmp.ne.s32.totalorder %s140, %s141
    %p150 = scmp.eq.s32.totalorder %s25, 0
    %p151 = por %p149, %p150
    %p152 = scmp.ne.s32.totalorder %s140, %s141
    %p153 = scmp.eq.s32.totalorder %s26, 1
    %p154 = por %p152, %p153
    %p156 = scmp.ne.s32.totalorder %s141, %s155
    %p157 = scmp.eq.s32.totalorder %s26, 0
    %p158 = por %p156, %p157
    %s160 = sadd.s32 %s159, 1
    %p163 = scmp.eq.s32.totalorder %s20, 1
    %p164 = scmp.ne.s32.totalorder %s159, %s161
    %p165 = scmp.eq.s32.totalorder %s20, 0
    %p166 = por %p164, %p165
    %p167 = scmp.ne.s32.totalorder %s159, %s161
    %p168 = scmp.eq.s32.totalorder %s25, 1
    %p169 = por %p167, %p168
    %p170 = scmp.ne.s32.totalorder %s161, %s162
    %p171 = scmp.eq.s32.totalorder %s25, 0
    %p172 = por %p170, %p171
    %p173 = scmp.ne.s32.totalorder %s161, %s162
    %p174 = scmp.eq.s32.totalorder %s26, 1
    %p175 = por %p173, %p174
    %p177 = scmp.ne.s32.totalorder %s162, %s176
    %p178 = scmp.eq.s32.totalorder %s26, 0
    %p179 = por %p177, %p178
    %s181 = sadd.s32 %s180, 1
    %p184 = scmp.eq.s32.totalorder %s20, 1
    %p185 = scmp.ne.s32.totalorder %s180, %s182
    %p186 = scmp.eq.s32.totalorder %s20, 0
    %p187 = por %p185, %p186
    %p188 = scmp.ne.s32.totalorder %s180, %s182
    %p189 = scmp.eq.s32.totalorder %s25, 1
    %p190 = por %p188, %p189
    %p191 = scmp.ne.s32.totalorder %s182, %s183
    %p192 = scmp.eq.s32.totalorder %s25, 0
    %p193 = por %p191, %p192
    %p194 = scmp.ne.s32.totalorder %s182, %s183
    %p195 = scmp.eq.s32.totalorder %s26, 1
    %p196 = por %p194, %p195
    %p198 = scmp.ne.s32.totalorder %s183, %s197
    %p199 = scmp.eq.s32.totalorder %s26, 0
    %p200 = por %p198, %p199
    %s202 = sadd.s32 %s201, 1
    %p205 = scmp.eq.s32.totalorder %s20, 1
    %p206 = scmp.ne.s32.totalorder %s201, %s203
    %p207 = scmp.eq.s32.totalorder %s20, 0
    %p208 = por %p206, %p207
    %p209 = scmp.ne.s32.totalorder %s201, %s203
    %p210 = scmp.eq.s32.totalorder %s25, 1
    %p211 = por %p209, %p210
    %p212 = scmp.ne.s32.totalorder %s203, %s204
    %p213 = scmp.eq.s32.totalorder %s25, 0
    %p214 = por %p212, %p213
    %p215 = scmp.ne.s32.totalorder %s203, %s204
    %p216 = scmp.eq.s32.totalorder %s26, 1
    %p217 = por %p215, %p216
    %p219 = scmp.ne.s32.totalorder %s204, %s218
    %p220 = scmp.eq.s32.totalorder %s26, 0
    %p221 = por %p219, %p220
    %s223 = sadd.s32 %s222, 1
    %p226 = scmp.eq.s32.totalorder %s20, 1
    %p227 = scmp.ne.s32.totalorder %s222, %s224
    %p228 = scmp.eq.s32.totalorder %s20, 0
    %p229 = por %p227, %p228
    %p230 = scmp.ne.s32.totalorder %s222, %s224
    %p231 = scmp.eq.s32.totalorder %s25, 1
    %p232 = por %p230, %p231
    %p233 = scmp.ne.s32.totalorder %s224, %s225
    %p234 = scmp.eq.s32.totalorder %s25, 0
    %p235 = por %p233, %p234
    %p236 = scmp.ne.s32.totalorder %s224, %s225
    %p237 = scmp.eq.s32.totalorder %s26, 1
    %p238 = por %p236, %p237
    %p240 = scmp.ne.s32.totalorder %s225, %s239
    %p241 = scmp.eq.s32.totalorder %s26, 0
    %p242 = por %p240, %p241
    %s244 = sadd.s32 %s243, 1
    %p247 = scmp.eq.s32.totalorder %s20, 1
    %p248 = scmp.ne.s32.totalorder %s243, %s245
    %p249 = scmp.eq.s32.totalorder %s20, 0
    %p250 = por %p248, %p249
    %p251 = scmp.ne.s32.totalorder %s243, %s245
    %p252 = scmp.eq.s32.totalorder %s25, 1
    %p253 = por %p251, %p252
    %p254 = scmp.ne.s32.totalorder %s245, %s246
    %p255 = scmp.eq.s32.totalorder %s25, 0
    %p256 = por %p254, %p255
    %p257 = scmp.ne.s32.totalorder %s245, %s246
    %p258 = scmp.eq.s32.totalorder %s26, 1
    %p259 = por %p257, %p258
    %p261 = scmp.ne.s32.totalorder %s246, %s260
    %p262 = scmp.eq.s32.totalorder %s26, 0
    %p263 = por %p261, %p262
    %s265 = sadd.s32 %s264, 1
    %p268 = scmp.eq.s32.totalorder %s20, 1
    %p269 = scmp.ne.s32.totalorder %s264, %s266
    %p270 = scmp.eq.s32.totalorder %s20, 0
    %p271 = por %p269, %p270
    %p272 = scmp.ne.s32.totalorder %s264, %s266
    %p273 = scmp.eq.s32.totalorder %s25, 1
    %p274 = por %p272, %p273
    %p275 = scmp.ne.s32.totalorder %s266, %s267
    %p276 = scmp.eq.s32.totalorder %s25, 0
    %p277 = por %p275, %p276
    %p278 = scmp.ne.s32.totalorder %s266, %s267
    %p279 = scmp.eq.s32.totalorder %s26, 1
    %p280 = por %p278, %p279
    %p282 = scmp.ne.s32.totalorder %s267, %s281
    %p283 = scmp.eq.s32.totalorder %s26, 0
    %p284 = por %p282, %p283
    %s285 = ssub.s32 %s20, %s27
    %p286 = scmp.eq.s32.totalorder %s285, 0
    %s288 = sadd.s32 %s287, 1
    %s289 = scalar_select %p286, %s287, %s288
    %p292 = pneg %p286
    %p293 = scmp.eq.s32.totalorder %s20, 1
    %p294 = por %p292, %p293
    %p295 = scmp.ne.s32.totalorder %s287, %s290
    %p296 = scmp.eq.s32.totalorder %s20, 0
    %p297 = por %p295, %p296
    %p298 = scmp.ne.s32.totalorder %s287, %s290
    %p299 = scmp.eq.s32.totalorder %s25, 1
    %p300 = por %p298, %p299
    %p301 = scmp.ne.s32.totalorder %s290, %s291
    %p302 = scmp.eq.s32.totalorder %s25, 0
    %p303 = por %p301, %p302
    %p304 = scmp.ne.s32.totalorder %s290, %s291
    %p305 = scmp.eq.s32.totalorder %s26, 1
    %p306 = por %p304, %p305
    %p308 = scmp.ne.s32.totalorder %s291, %s307
    %p309 = scmp.eq.s32.totalorder %s26, 0
    %p310 = por %p308, %p309
    %s311 = ssub.s32 %s20, %s27
    %p312 = scmp.eq.s32.totalorder %s311, 0
    %s314 = sadd.s32 %s313, 1
    %s315 = scalar_select %p312, %s313, %s314
    %p318 = pneg %p312
    %p319 = scmp.eq.s32.totalorder %s20, 1
    %p320 = por %p318, %p319
    %p321 = scmp.ne.s32.totalorder %s313, %s316
    %p322 = scmp.eq.s32.totalorder %s20, 0
    %p323 = por %p321, %p322
    %p324 = scmp.ne.s32.totalorder %s313, %s316
    %p325 = scmp.eq.s32.totalorder %s25, 1
    %p326 = por %p324, %p325
    %p327 = scmp.ne.s32.totalorder %s316, %s317
    %p328 = scmp.eq.s32.totalorder %s25, 0
    %p329 = por %p327, %p328
    %p330 = scmp.ne.s32.totalorder %s316, %s317
    %p331 = scmp.eq.s32.totalorder %s26, 1
    %p332 = por %p330, %p331
    %p334 = scmp.ne.s32.totalorder %s317, %s333
    %p335 = scmp.eq.s32.totalorder %s26, 0
    %p336 = por %p334, %p335
    %p337 = scmp.le.s32.totalorder 1, %s20
    %p338 = scmp.lt.s32.totalorder %s20, 3
    %p339 = pnand %p337, %p338
    %p340 = pneg %p339
    // Predicated region
    $region9: #{dag_gnn_forward.1} parent=5 // pred_check
      _
    $region10: #{dag_gnn_forward.1} parent=5 // pred_check_branch
      %342 = sbr.rel (%p339) target = $region12
    $region11: #{dag_gnn_forward.1} parent=5 // pred_region
      %s343 = ssub.s32 %s20, 1
      // Predicated region
      $region13: #{dag_gnn_forward.1} parent=11 // pred_check
        %p344 = pneg %p67
      $region14: #{dag_gnn_forward.1} parent=11 // pred_check_branch
        %346 = sbr.rel (%p344) target = $region16
      $region15: #{dag_gnn_forward.1} parent=11 // pred_region
        _
      $region16: #{dag_gnn_forward.1} parent=11 // pred_fallthru
        _
      // Predicated region
      $region17: #{dag_gnn_forward.1} parent=11 // pred_check
        %p347 = pneg %p88
      $region18: #{dag_gnn_forward.1} parent=11 // pred_check_branch
        %349 = sbr.rel (%p347) target = $region20
      $region19: #{dag_gnn_forward.1} parent=11 // pred_region
        _
      $region20: #{dag_gnn_forward.1} parent=11 // pred_fallthru
        _
      // Predicated region
      $region21: #{dag_gnn_forward.1} parent=11 // pred_check
        %p350 = pneg %p109
      $region22: #{dag_gnn_forward.1} parent=11 // pred_check_branch
        %352 = sbr.rel (%p350) target = $region24
      $region23: #{dag_gnn_forward.1} parent=11 // pred_region
        _
      $region24: #{dag_gnn_forward.1} parent=11 // pred_fallthru
        _
      // Predicated region
      $region25: #{dag_gnn_forward.1} parent=11 // pred_check
        %p353 = pneg %p130
      $region26: #{dag_gnn_forward.1} parent=11 // pred_check_branch
        %355 = sbr.rel (%p353) target = $region28
      $region27: #{dag_gnn_forward.1} parent=11 // pred_region
        _
      $region28: #{dag_gnn_forward.1} parent=11 // pred_fallthru
        _
      // Predicated region
      $region29: #{dag_gnn_forward.1} parent=11 // pred_check
        %p356 = pneg %p151
      $region30: #{dag_gnn_forward.1} parent=11 // pred_check_branch
        %358 = sbr.rel (%p356) target = $region32
      $region31: #{dag_gnn_forward.1} parent=11 // pred_region
        _
      $region32: #{dag_gnn_forward.1} parent=11 // pred_fallthru
        _
      // Predicated region
      $region33: #{dag_gnn_forward.1} parent=11 // pred_check
        %p359 = pneg %p172
      $region34: #{dag_gnn_forward.1} parent=11 // pred_check_branch
        %361 = sbr.rel (%p359) target = $region36
      $region35: #{dag_gnn_forward.1} parent=11 // pred_region
        _
      $region36: #{dag_gnn_forward.1} parent=11 // pred_fallthru
        _
      // Predicated region
      $region37: #{dag_gnn_forward.1} parent=11 // pred_check
        %p362 = pneg %p193
      $region38: #{dag_gnn_forward.1} parent=11 // pred_check_branch
        %364 = sbr.rel (%p362) target = $region40
      $region39: #{dag_gnn_forward.1} parent=11 // pred_region
        _
      $region40: #{dag_gnn_forward.1} parent=11 // pred_fallthru
        _
      // Predicated region
      $region41: #{dag_gnn_forward.1} parent=11 // pred_check
        %p365 = pneg %p214
      $region42: #{dag_gnn_forward.1} parent=11 // pred_check_branch
        %367 = sbr.rel (%p365) target = $region44
      $region43: #{dag_gnn_forward.1} parent=11 // pred_region
        _
      $region44: #{dag_gnn_forward.1} parent=11 // pred_fallthru
        _
      // Predicated region
      $region45: #{dag_gnn_forward.1} parent=11 // pred_check
        %p368 = pneg %p235
      $region46: #{dag_gnn_forward.1} parent=11 // pred_check_branch
        %370 = sbr.rel (%p368) target = $region48
      $region47: #{dag_gnn_forward.1} parent=11 // pred_region
        _
      $region48: #{dag_gnn_forward.1} parent=11 // pred_fallthru
        _
      // Predicated region
      $region49: #{dag_gnn_forward.1} parent=11 // pred_check
        %p371 = pneg %p256
      $region50: #{dag_gnn_forward.1} parent=11 // pred_check_branch
        %373 = sbr.rel (%p371) target = $region52
      $region51: #{dag_gnn_forward.1} parent=11 // pred_region
        _
      $region52: #{dag_gnn_forward.1} parent=11 // pred_fallthru
        _
      // Predicated region
      $region53: #{dag_gnn_forward.1} parent=11 // pred_check
        %p374 = pneg %p277
      $region54: #{dag_gnn_forward.1} parent=11 // pred_check_branch
        %376 = sbr.rel (%p374) target = $region56
      $region55: #{dag_gnn_forward.1} parent=11 // pred_region
        _
      $region56: #{dag_gnn_forward.1} parent=11 // pred_fallthru
        _
    $region12: #{dag_gnn_forward.1} parent=5 // pred_fallthru
      _
    %p377 = scmp.lt.s32.totalorder %s20, 2
    // Predicated region
    $region57: #{dag_gnn_forward.1} parent=5 // pred_check
      %p378 = pneg %p377
    $region58: #{dag_gnn_forward.1} parent=5 // pred_check_branch
      %380 = sbr.rel (%p378) target = $region60
    $region59: #{dag_gnn_forward.1} parent=5 // pred_region
      // Predicated region
      $region61: #{dag_gnn_forward.1} parent=59 // pred_check
        %p381 = pneg %p40
      $region62: #{dag_gnn_forward.1} parent=59 // pred_check_branch
        %383 = sbr.rel (%p381) target = $region64
      $region63: #{dag_gnn_forward.1} parent=59 // pred_region
        %p384 = scmp.lt.s32.totalorder %s20, 1
        %s385 = scalar_select %p384, %s20, 1
        %s386 = smul.addr %s385, 8
        %s387 = scalar_lea.vmem %s0, %s386
      $region64: #{dag_gnn_forward.1} parent=59 // pred_fallthru
        _
    $region60: #{dag_gnn_forward.1} parent=5 // pred_fallthru
      _
    %p388 = scmp.le.s32.totalorder 1, %s20
    %p389 = scmp.lt.s32.totalorder %s20, 3
    %p390 = pnand %p388, %p389
    %p391 = pneg %p390
    // Predicated region
    $region65: #{dag_gnn_forward.1} parent=5 // pred_check
      _
    $region66: #{dag_gnn_forward.1} parent=5 // pred_check_branch
      %393 = sbr.rel (%p390) target = $region68
    $region67: #{dag_gnn_forward.1} parent=5 // pred_region
      %s394 = ssub.s32 %s20, 1
      %p395 = scmp.lt.s32.totalorder %s25, 1
      %s396 = scalar_select %p395, %s25, 1
      %s397 = smul.addr %s396, 8
      %s398 = scalar_lea.vmem %s0, %s397
      %p399 = pneg %p46
      %p400 = pneg %p43
      %p401 = pneg %p67
      %p402 = pneg %p64
      %p403 = pneg %p88
      %p404 = pneg %p85
      %p405 = pneg %p109
      %p406 = pneg %p106
      %p407 = pneg %p130
      %p408 = pneg %p127
      %p409 = pneg %p151
      %p410 = pneg %p148
      %p411 = pneg %p172
      %p412 = pneg %p169
      %p413 = pneg %p193
      %p414 = pneg %p190
      %p415 = pneg %p214
      %p416 = pneg %p211
      %p417 = pneg %p235
      %p418 = pneg %p232
      %p419 = pneg %p256
      %p420 = pneg %p253
      %p421 = pneg %p277
      %p422 = pneg %p274
      %p423 = pneg %p303
      %p424 = pneg %p300
      %p425 = scmp.lt.s32.totalorder %s25, 1
      %s426 = scalar_select %p425, %s25, 1
      %s427 = smul.addr %s426, 8
      %s428 = scalar_lea.vmem %s12, %s427
      %p429 = pneg %p329
      %p430 = pneg %p326
      %p431 = scmp.lt.s32.totalorder %s25, 1
      %s432 = scalar_select %p431, %s25, 1
      %s433 = smul.addr %s432, 8
      %s434 = scalar_lea.vmem %s13, %s433
      %p435 = scmp.lt.s32.totalorder %s25, 1
      %s436 = scalar_select %p435, %s25, 1
      %s437 = smul.addr %s436, 8
      %s438 = scalar_lea.vmem %s0, %s437
      %p439 = scmp.lt.s32.totalorder %s25, 1
      %s440 = scalar_select %p439, %s25, 1
      %s441 = smul.addr %s440, 8
      %s442 = scalar_lea.vmem %s12, %s441
      %p443 = scmp.lt.s32.totalorder %s25, 1
      %s444 = scalar_select %p443, %s25, 1
      %s445 = smul.addr %s444, 8
      %s446 = scalar_lea.vmem %s13, %s445
      %v447 = vld [vmem:[%s438] sm:$0xff]
      %v448 = vld [vmem:[%s3] sm:$0xf]
      %v449 = vld [vmem:[%s4] sm:$0x1]
      %v451 = vlaneseq
      %v452 = vshrl.u32 %v451, 7
      %v453 = vsub.s32 0, %v452
      %v454 = vrot.slane %v449, %v453
      %vm456 = vcmask 31744
      %v458 = vsel %vm456, %v447, 0
      %vm460 = vcmask 1043456
      %v462 = vsel %vm460, %v448, 0
      %464 = vmatprep.subr.mxu0 0.0
      %465 = vmatpush1.msra.mxu0 %v462
      %466 = vmatprep.subr.mxu0 0.0
      %467 = vmatpush1.msra.mxu0 0.0
      %468 = vmatprep.subr.mxu0 0.0
      %469 = vmatpush1.msra.mxu0 0.0
      %470 = vmatprep.subr.mxu0 0.0
      %471 = vmatpush1.msra.mxu0 0.0
      %472 = vmatprep.subr.mxu0 0.0
      %473 = vmatpush1.msra.mxu0 0.0
      %474 = vmatprep.subr.mxu0 0.0
      %475 = vmatpush1.msra.mxu0 0.0
      %476 = vmatprep.subr.mxu0 0.0
      %477 = vmatpush1.msra.mxu0 0.0
      %478 = vmatprep.subr.mxu0 0.0
      %479 = vmatpush1.msra.mxu0 0.0
      %480 = vmatprep.subr.mxu0 0.0
      %481 = vmatpush1.msra.mxu0 0.0
      %482 = vmatprep.subr.mxu0 0.0
      %483 = vmatpush1.msra.mxu0 0.0
      %484 = vmatprep.subr.mxu0 0.0
      %485 = vmatpush1.msra.mxu0 0.0
      %486 = vmatprep.subr.mxu0 0.0
      %487 = vmatpush1.msra.mxu0 0.0
      %488 = vmatprep.subr.mxu0 0.0
      %489 = vmatpush1.msra.mxu0 0.0
      %490 = vmatprep.subr.mxu0 0.0
      %491 = vmatpush1.msra.mxu0 0.0
      %492 = vmatprep.subr.mxu0 0.0
      %493 = vmatpush1.msra.mxu0 0.0
      %494 = vmatprep.subr.mxu0 0.0
      %495 = vmatpush1.msra.mxu0 0.0
      %496 = vmatprep.subr.mxu0 0.0
      %497 = vmatpush1.msra.mxu0 0.0
      %498 = vmatprep.subr.mxu0 0.0
      %499 = vmatpush1.msra.mxu0 0.0
      %500 = vmatprep.subr.mxu0 0.0
      %501 = vmatpush1.msra.mxu0 0.0
      %502 = vmatprep.subr.mxu0 0.0
      %503 = vmatpush1.msra.mxu0 0.0
      %504 = vmatprep.subr.mxu0 0.0
      %505 = vmatpush1.msra.mxu0 0.0
      %506 = vmatprep.subr.mxu0 0.0
      %507 = vmatpush1.msra.mxu0 0.0
      %508 = vmatprep.subr.mxu0 0.0
      %509 = vmatpush1.msra.mxu0 0.0
      %510 = vmatprep.subr.mxu0 0.0
      %511 = vmatpush1.msra.mxu0 0.0
      %512 = vmatprep.subr.mxu0 0.0
      %513 = vmatpush1.msra.mxu0 0.0
      %514 = vmatprep.subr.mxu0 0.0
      %515 = vmatpush1.msra.mxu0 0.0
      %516 = vmatprep.subr.mxu0 0.0
      %517 = vmatpush1.msra.mxu0 0.0
      %518 = vmatprep.subr.mxu0 0.0
      %519 = vmatpush1.msra.mxu0 0.0
      %520 = vmatprep.subr.mxu0 0.0
      %521 = vmatpush1.msra.mxu0 0.0
      %522 = vmatprep.subr.mxu0 0.0
      %523 = vmatpush1.msra.mxu0 0.0
      %524 = vmatprep.subr.mxu0 0.0
      %525 = vmatpush1.msra.mxu0 0.0
      %526 = vmatprep.subr.mxu0 0.0
      %527 = vmatpush1.msra.mxu0 0.0
      %528 = vmatprep.mubr.f32.mxu0 0.0
      %529 = vmatmul.mubr.f32.gmra.mrb[0].mxu0 %v458
      %v530 = vpop.f32.mrb[0].mxu0
      %v531 = vadd.f32 %v454, %v530
      %v532 = vpop.f32.mrb[0].mxu0
      %533 = vdwg.mxu0
      %v534 = vmax.f32 %v531, 0.0
      %v535 = vld [vmem:[%s5] sm:$0xff]
      %v536 = vld [vmem:[%s5 + $0x8] sm:$0xff]
      %v537 = vld [vmem:[%s5 + $0x10] sm:$0xff]
      %v538 = vld [vmem:[%s5 + $0x18] sm:$0xff]
      %v539 = vld [vmem:[%s6] sm:$0x1]
      %v541 = vlaneseq
      %v542 = vshrl.u32 %v541, 7
      %v543 = vsub.s32 0, %v542
      %v544 = vrot.slane %v539, %v543
      %vm546 = vcmask 261120
      %v548 = vsel %vm546, %v534, 0
      %550 = vmatprep.subr.mxu0 0.0
      %551 = vmatpush1.msra.mxu0 %v535
      %552 = vmatprep.subr.mxu0 0.0
      %553 = vmatpush1.msra.mxu0 %v536
      %554 = vmatprep.subr.mxu0 0.0
      %555 = vmatpush1.msra.mxu0 %v537
      %556 = vmatprep.subr.mxu0 0.0
      %557 = vmatpush1.msra.mxu0 %v538
      %558 = vmatprep.subr.mxu0 0.0
      %559 = vmatpush1.msra.mxu0 0.0
      %560 = vmatprep.subr.mxu0 0.0
      %561 = vmatpush1.msra.mxu0 0.0
      %562 = vmatprep.subr.mxu0 0.0
      %563 = vmatpush1.msra.mxu0 0.0
      %564 = vmatprep.subr.mxu0 0.0
      %565 = vmatpush1.msra.mxu0 0.0
      %566 = vmatprep.subr.mxu0 0.0
      %567 = vmatpush1.msra.mxu0 0.0
      %568 = vmatprep.subr.mxu0 0.0
      %569 = vmatpush1.msra.mxu0 0.0
      %570 = vmatprep.subr.mxu0 0.0
      %571 = vmatpush1.msra.mxu0 0.0
      %572 = vmatprep.subr.mxu0 0.0
      %573 = vmatpush1.msra.mxu0 0.0
      %574 = vmatprep.subr.mxu0 0.0
      %575 = vmatpush1.msra.mxu0 0.0
      %576 = vmatprep.subr.mxu0 0.0
      %577 = vmatpush1.msra.mxu0 0.0
      %578 = vmatprep.subr.mxu0 0.0
      %579 = vmatpush1.msra.mxu0 0.0
      %580 = vmatprep.subr.mxu0 0.0
      %581 = vmatpush1.msra.mxu0 0.0
      %582 = vmatprep.subr.mxu0 0.0
      %583 = vmatpush1.msra.mxu0 0.0
      %584 = vmatprep.subr.mxu0 0.0
      %585 = vmatpush1.msra.mxu0 0.0
      %586 = vmatprep.subr.mxu0 0.0
      %587 = vmatpush1.msra.mxu0 0.0
      %588 = vmatprep.subr.mxu0 0.0
      %589 = vmatpush1.msra.mxu0 0.0
      %590 = vmatprep.subr.mxu0 0.0
      %591 = vmatpush1.msra.mxu0 0.0
      %592 = vmatprep.subr.mxu0 0.0
      %593 = vmatpush1.msra.mxu0 0.0
      %594 = vmatprep.subr.mxu0 0.0
      %595 = vmatpush1.msra.mxu0 0.0
      %596 = vmatprep.subr.mxu0 0.0
      %597 = vmatpush1.msra.mxu0 0.0
      %598 = vmatprep.subr.mxu0 0.0
      %599 = vmatpush1.msra.mxu0 0.0
      %600 = vmatprep.subr.mxu0 0.0
      %601 = vmatpush1.msra.mxu0 0.0
      %602 = vmatprep.subr.mxu0 0.0
      %603 = vmatpush1.msra.mxu0 0.0
      %604 = vmatprep.subr.mxu0 0.0
      %605 = vmatpush1.msra.mxu0 0.0
      %606 = vmatprep.subr.mxu0 0.0
      %607 = vmatpush1.msra.mxu0 0.0
      %608 = vmatprep.subr.mxu0 0.0
      %609 = vmatpush1.msra.mxu0 0.0
      %610 = vmatprep.subr.mxu0 0.0
      %611 = vmatpush1.msra.mxu0 0.0
      %612 = vmatprep.subr.mxu0 0.0
      %613 = vmatpush1.msra.mxu0 0.0
      %614 = vmatprep.mubr.f32.mxu0 0.0
      %615 = vmatmul.mubr.f32.gmra.mrb[0].mxu0 %v548
      %v616 = vpop.f32.mrb[0].mxu0
      %v617 = vadd.f32 %v544, %v616
      %v618 = vpop.f32.mrb[0].mxu0
      %619 = vdwg.mxu0
      %v620 = vld [vmem:[%s11] sm:$0x1]
      %v621 = vld [vmem:[%s1] sm:$0xff]
      %v623 = vlaneseq
      %v624 = vshrl.u32 %v623, 7
      %v625 = vsub.s32 0, %v624
      %v626 = vrot.slane %v620, %v625
      %v628 = vadd.f32 %v617, %v626
      %vm629 = vcmask 64512
      %v631 = vsel %vm629, %v621, 0
      %633 = vmatprep.subr.mxu0 0.0
      %634 = vmatpush1.msra.mxu0 %v628
      %635 = vmatprep.subr.mxu0 0.0
      %636 = vmatpush1.msra.mxu0 0.0
      %637 = vmatprep.subr.mxu0 0.0
      %638 = vmatpush1.msra.mxu0 0.0
      %639 = vmatprep.subr.mxu0 0.0
      %640 = vmatpush1.msra.mxu0 0.0
      %641 = vmatprep.subr.mxu0 0.0
      %642 = vmatpush1.msra.mxu0 0.0
      %643 = vmatprep.subr.mxu0 0.0
      %644 = vmatpush1.msra.mxu0 0.0
      %645 = vmatprep.subr.mxu0 0.0
      %646 = vmatpush1.msra.mxu0 0.0
      %647 = vmatprep.subr.mxu0 0.0
      %648 = vmatpush1.msra.mxu0 0.0
      %649 = vmatprep.subr.mxu0 0.0
      %650 = vmatpush1.msra.mxu0 0.0
      %651 = vmatprep.subr.mxu0 0.0
      %652 = vmatpush1.msra.mxu0 0.0
      %653 = vmatprep.subr.mxu0 0.0
      %654 = vmatpush1.msra.mxu0 0.0
      %655 = vmatprep.subr.mxu0 0.0
      %656 = vmatpush1.msra.mxu0 0.0
      %657 = vmatprep.subr.mxu0 0.0
      %658 = vmatpush1.msra.mxu0 0.0
      %659 = vmatprep.subr.mxu0 0.0
      %660 = vmatpush1.msra.mxu0 0.0
      %661 = vmatprep.subr.mxu0 0.0
      %662 = vmatpush1.msra.mxu0 0.0
      %663 = vmatprep.subr.mxu0 0.0
      %664 = vmatpush1.msra.mxu0 0.0
      %665 = vmatprep.subr.mxu0 0.0
      %666 = vmatpush1.msra.mxu0 0.0
      %667 = vmatprep.subr.mxu0 0.0
      %668 = vmatpush1.msra.mxu0 0.0
      %669 = vmatprep.subr.mxu0 0.0
      %670 = vmatpush1.msra.mxu0 0.0
      %671 = vmatprep.subr.mxu0 0.0
      %672 = vmatpush1.msra.mxu0 0.0
      %673 = vmatprep.subr.mxu0 0.0
      %674 = vmatpush1.msra.mxu0 0.0
      %675 = vmatprep.subr.mxu0 0.0
      %676 = vmatpush1.msra.mxu0 0.0
      %677 = vmatprep.subr.mxu0 0.0
      %678 = vmatpush1.msra.mxu0 0.0
      %679 = vmatprep.subr.mxu0 0.0
      %680 = vmatpush1.msra.mxu0 0.0
      %681 = vmatprep.subr.mxu0 0.0
      %682 = vmatpush1.msra.mxu0 0.0
      %683 = vmatprep.subr.mxu0 0.0
      %684 = vmatpush1.msra.mxu0 0.0
      %685 = vmatprep.subr.mxu0 0.0
      %686 = vmatpush1.msra.mxu0 0.0
      %687 = vmatprep.subr.mxu0 0.0
      %688 = vmatpush1.msra.mxu0 0.0
      %689 = vmatprep.subr.mxu0 0.0
      %690 = vmatpush1.msra.mxu0 0.0
      %691 = vmatprep.subr.mxu0 0.0
      %692 = vmatpush1.msra.mxu0 0.0
      %693 = vmatprep.subr.mxu0 0.0
      %694 = vmatpush1.msra.mxu0 0.0
      %695 = vmatprep.subr.mxu0 0.0
      %696 = vmatpush1.msra.mxu0 0.0
      %697 = vmatprep.mubr.f32.mxu0 0.0
      %698 = vmatmul.mubr.f32.gmra.mrb[0].mxu0 %v631
      %v699 = vpop.f32.mrb[0].mxu0
      %v700 = vadd.f32 0.0, %v699
      %v701 = vpop.f32.mrb[0].mxu0
      %702 = vdwg.mxu0
      %v703 = vsub.f32 %v700, %v626
      %704 = vst.msk [vmem:[%s442] sm:$0xff] %vm456, %v703
      %v705 = vld [vmem:[%s2] sm:$0xff]
      %v706 = vadd.f32 %v703, %v626
      %v708 = vsel %vm629, %v705, 0
      %710 = vmatprep.subr.mxu0 0.0
      %711 = vmatpush1.msra.mxu0 %v706
      %712 = vmatprep.subr.mxu0 0.0
      %713 = vmatpush1.msra.mxu0 0.0
      %714 = vmatprep.subr.mxu0 0.0
      %715 = vmatpush1.msra.mxu0 0.0
      %716 = vmatprep.subr.mxu0 0.0
      %717 = vmatpush1.msra.mxu0 0.0
      %718 = vmatprep.subr.mxu0 0.0
      %719 = vmatpush1.msra.mxu0 0.0
      %720 = vmatprep.subr.mxu0 0.0
      %721 = vmatpush1.msra.mxu0 0.0
      %722 = vmatprep.subr.mxu0 0.0
      %723 = vmatpush1.msra.mxu0 0.0
      %724 = vmatprep.subr.mxu0 0.0
      %725 = vmatpush1.msra.mxu0 0.0
      %726 = vmatprep.subr.mxu0 0.0
      %727 = vmatpush1.msra.mxu0 0.0
      %728 = vmatprep.subr.mxu0 0.0
      %729 = vmatpush1.msra.mxu0 0.0
      %730 = vmatprep.subr.mxu0 0.0
      %731 = vmatpush1.msra.mxu0 0.0
      %732 = vmatprep.subr.mxu0 0.0
      %733 = vmatpush1.msra.mxu0 0.0
      %734 = vmatprep.subr.mxu0 0.0
      %735 = vmatpush1.msra.mxu0 0.0
      %736 = vmatprep.subr.mxu0 0.0
      %737 = vmatpush1.msra.mxu0 0.0
      %738 = vmatprep.subr.mxu0 0.0
      %739 = vmatpush1.msra.mxu0 0.0
      %740 = vmatprep.subr.mxu0 0.0
      %741 = vmatpush1.msra.mxu0 0.0
      %742 = vmatprep.subr.mxu0 0.0
      %743 = vmatpush1.msra.mxu0 0.0
      %744 = vmatprep.subr.mxu0 0.0
      %745 = vmatpush1.msra.mxu0 0.0
      %746 = vmatprep.subr.mxu0 0.0
      %747 = vmatpush1.msra.mxu0 0.0
      %748 = vmatprep.subr.mxu0 0.0
      %749 = vmatpush1.msra.mxu0 0.0
      %750 = vmatprep.subr.mxu0 0.0
      %751 = vmatpush1.msra.mxu0 0.0
      %752 = vmatprep.subr.mxu0 0.0
      %753 = vmatpush1.msra.mxu0 0.0
      %754 = vmatprep.subr.mxu0 0.0
      %755 = vmatpush1.msra.mxu0 0.0
      %756 = vmatprep.subr.mxu0 0.0
      %757 = vmatpush1.msra.mxu0 0.0
      %758 = vmatprep.subr.mxu0 0.0
      %759 = vmatpush1.msra.mxu0 0.0
      %760 = vmatprep.subr.mxu0 0.0
      %761 = vmatpush1.msra.mxu0 0.0
      %762 = vmatprep.subr.mxu0 0.0
      %763 = vmatpush1.msra.mxu0 0.0
      %764 = vmatprep.subr.mxu0 0.0
      %765 = vmatpush1.msra.mxu0 0.0
      %766 = vmatprep.subr.mxu0 0.0
      %767 = vmatpush1.msra.mxu0 0.0
      %768 = vmatprep.subr.mxu0 0.0
      %769 = vmatpush1.msra.mxu0 0.0
      %770 = vmatprep.subr.mxu0 0.0
      %771 = vmatpush1.msra.mxu0 0.0
      %772 = vmatprep.subr.mxu0 0.0
      %773 = vmatpush1.msra.mxu0 0.0
      %774 = vmatprep.mubr.f32.mxu0 0.0
      %775 = vmatmul.mubr.f32.gmra.mrb[0].mxu0 %v708
      %v776 = vpop.f32.mrb[0].mxu0
      %v777 = vadd.f32 0.0, %v776
      %v778 = vpop.f32.mrb[0].mxu0
      %779 = vdwg.mxu0
      %v780 = vsub.f32 %v777, %v626
      %v781 = vld [vmem:[%s7] sm:$0xf]
      %v782 = vld [vmem:[%s8] sm:$0x1]
      %v784 = vlaneseq
      %v785 = vshrl.u32 %v784, 7
      %v786 = vsub.s32 0, %v785
      %v787 = vrot.slane %v782, %v786
      %v790 = vsel %vm456, %v780, 0
      %v793 = vsel %vm460, %v781, 0
      %795 = vmatprep.subr.mxu0 0.0
      %796 = vmatpush1.msra.mxu0 %v793
      %797 = vmatprep.subr.mxu0 0.0
      %798 = vmatpush1.msra.mxu0 0.0
      %799 = vmatprep.subr.mxu0 0.0
      %800 = vmatpush1.msra.mxu0 0.0
      %801 = vmatprep.subr.mxu0 0.0
      %802 = vmatpush1.msra.mxu0 0.0
      %803 = vmatprep.subr.mxu0 0.0
      %804 = vmatpush1.msra.mxu0 0.0
      %805 = vmatprep.subr.mxu0 0.0
      %806 = vmatpush1.msra.mxu0 0.0
      %807 = vmatprep.subr.mxu0 0.0
      %808 = vmatpush1.msra.mxu0 0.0
      %809 = vmatprep.subr.mxu0 0.0
      %810 = vmatpush1.msra.mxu0 0.0
      %811 = vmatprep.subr.mxu0 0.0
      %812 = vmatpush1.msra.mxu0 0.0
      %813 = vmatprep.subr.mxu0 0.0
      %814 = vmatpush1.msra.mxu0 0.0
      %815 = vmatprep.subr.mxu0 0.0
      %816 = vmatpush1.msra.mxu0 0.0
      %817 = vmatprep.subr.mxu0 0.0
      %818 = vmatpush1.msra.mxu0 0.0
      %819 = vmatprep.subr.mxu0 0.0
      %820 = vmatpush1.msra.mxu0 0.0
      %821 = vmatprep.subr.mxu0 0.0
      %822 = vmatpush1.msra.mxu0 0.0
      %823 = vmatprep.subr.mxu0 0.0
      %824 = vmatpush1.msra.mxu0 0.0
      %825 = vmatprep.subr.mxu0 0.0
      %826 = vmatpush1.msra.mxu0 0.0
      %827 = vmatprep.subr.mxu0 0.0
      %828 = vmatpush1.msra.mxu0 0.0
      %829 = vmatprep.subr.mxu0 0.0
      %830 = vmatpush1.msra.mxu0 0.0
      %831 = vmatprep.subr.mxu0 0.0
      %832 = vmatpush1.msra.mxu0 0.0
      %833 = vmatprep.subr.mxu0 0.0
      %834 = vmatpush1.msra.mxu0 0.0
      %835 = vmatprep.subr.mxu0 0.0
      %836 = vmatpush1.msra.mxu0 0.0
      %837 = vmatprep.subr.mxu0 0.0
      %838 = vmatpush1.msra.mxu0 0.0
      %839 = vmatprep.subr.mxu0 0.0
      %840 = vmatpush1.msra.mxu0 0.0
      %841 = vmatprep.subr.mxu0 0.0
      %842 = vmatpush1.msra.mxu0 0.0
      %843 = vmatprep.subr.mxu0 0.0
      %844 = vmatpush1.msra.mxu0 0.0
      %845 = vmatprep.subr.mxu0 0.0
      %846 = vmatpush1.msra.mxu0 0.0
      %847 = vmatprep.subr.mxu0 0.0
      %848 = vmatpush1.msra.mxu0 0.0
      %849 = vmatprep.subr.mxu0 0.0
      %850 = vmatpush1.msra.mxu0 0.0
      %851 = vmatprep.subr.mxu0 0.0
      %852 = vmatpush1.msra.mxu0 0.0
      %853 = vmatprep.subr.mxu0 0.0
      %854 = vmatpush1.msra.mxu0 0.0
      %855 = vmatprep.subr.mxu0 0.0
      %856 = vmatpush1.msra.mxu0 0.0
      %857 = vmatprep.subr.mxu0 0.0
      %858 = vmatpush1.msra.mxu0 0.0
      %859 = vmatprep.mubr.f32.mxu0 0.0
      %860 = vmatmul.mubr.f32.gmra.mrb[0].mxu0 %v790
      %v861 = vpop.f32.mrb[0].mxu0
      %v862 = vadd.f32 %v787, %v861
      %v863 = vpop.f32.mrb[0].mxu0
      %864 = vdwg.mxu0
      %v865 = vmax.f32 %v862, 0.0
      %v866 = vld [vmem:[%s9] sm:$0xff]
      %v867 = vld [vmem:[%s9 + $0x8] sm:$0xff]
      %v868 = vld [vmem:[%s9 + $0x10] sm:$0xff]
      %v869 = vld [vmem:[%s9 + $0x18] sm:$0xff]
      %v870 = vld [vmem:[%s10] sm:$0x1]
      %v872 = vlaneseq
      %v873 = vshrl.u32 %v872, 7
      %v874 = vsub.s32 0, %v873
      %v875 = vrot.slane %v870, %v874
      %v878 = vsel %vm546, %v865, 0
      %880 = vmatprep.subr.mxu0 0.0
      %881 = vmatpush1.msra.mxu0 %v866
      %882 = vmatprep.subr.mxu0 0.0
      %883 = vmatpush1.msra.mxu0 %v867
      %884 = vmatprep.subr.mxu0 0.0
      %885 = vmatpush1.msra.mxu0 %v868
      %886 = vmatprep.subr.mxu0 0.0
      %887 = vmatpush1.msra.mxu0 %v869
      %888 = vmatprep.subr.mxu0 0.0
      %889 = vmatpush1.msra.mxu0 0.0
      %890 = vmatprep.subr.mxu0 0.0
      %891 = vmatpush1.msra.mxu0 0.0
      %892 = vmatprep.subr.mxu0 0.0
      %893 = vmatpush1.msra.mxu0 0.0
      %894 = vmatprep.subr.mxu0 0.0
      %895 = vmatpush1.msra.mxu0 0.0
      %896 = vmatprep.subr.mxu0 0.0
      %897 = vmatpush1.msra.mxu0 0.0
      %898 = vmatprep.subr.mxu0 0.0
      %899 = vmatpush1.msra.mxu0 0.0
      %900 = vmatprep.subr.mxu0 0.0
      %901 = vmatpush1.msra.mxu0 0.0
      %902 = vmatprep.subr.mxu0 0.0
      %903 = vmatpush1.msra.mxu0 0.0
      %904 = vmatprep.subr.mxu0 0.0
      %905 = vmatpush1.msra.mxu0 0.0
      %906 = vmatprep.subr.mxu0 0.0
      %907 = vmatpush1.msra.mxu0 0.0
      %908 = vmatprep.subr.mxu0 0.0
      %909 = vmatpush1.msra.mxu0 0.0
      %910 = vmatprep.subr.mxu0 0.0
      %911 = vmatpush1.msra.mxu0 0.0
      %912 = vmatprep.subr.mxu0 0.0
      %913 = vmatpush1.msra.mxu0 0.0
      %914 = vmatprep.subr.mxu0 0.0
      %915 = vmatpush1.msra.mxu0 0.0
      %916 = vmatprep.subr.mxu0 0.0
      %917 = vmatpush1.msra.mxu0 0.0
      %918 = vmatprep.subr.mxu0 0.0
      %919 = vmatpush1.msra.mxu0 0.0
      %920 = vmatprep.subr.mxu0 0.0
      %921 = vmatpush1.msra.mxu0 0.0
      %922 = vmatprep.subr.mxu0 0.0
      %923 = vmatpush1.msra.mxu0 0.0
      %924 = vmatprep.subr.mxu0 0.0
      %925 = vmatpush1.msra.mxu0 0.0
      %926 = vmatprep.subr.mxu0 0.0
      %927 = vmatpush1.msra.mxu0 0.0
      %928 = vmatprep.subr.mxu0 0.0
      %929 = vmatpush1.msra.mxu0 0.0
      %930 = vmatprep.subr.mxu0 0.0
      %931 = vmatpush1.msra.mxu0 0.0
      %932 = vmatprep.subr.mxu0 0.0
      %933 = vmatpush1.msra.mxu0 0.0
      %934 = vmatprep.subr.mxu0 0.0
      %935 = vmatpush1.msra.mxu0 0.0
      %936 = vmatprep.subr.mxu0 0.0
      %937 = vmatpush1.msra.mxu0 0.0
      %938 = vmatprep.subr.mxu0 0.0
      %939 = vmatpush1.msra.mxu0 0.0
      %940 = vmatprep.subr.mxu0 0.0
      %941 = vmatpush1.msra.mxu0 0.0
      %942 = vmatprep.subr.mxu0 0.0
      %943 = vmatpush1.msra.mxu0 0.0
      %944 = vmatprep.mubr.f32.mxu0 0.0
      %945 = vmatmul.mubr.f32.gmra.mrb[0].mxu0 %v878
      %v946 = vpop.f32.mrb[0].mxu0
      %v947 = vadd.f32 %v875, %v946
      %v948 = vpop.f32.mrb[0].mxu0
      %949 = vdwg.mxu0
      %950 = vst.msk [vmem:[%s446] sm:$0xff] %vm456, %v947
      %p951 = scmp.lt.s32.totalorder %s25, 1
      %s952 = scalar_select %p951, %s25, 1
      %s953 = smul.addr %s952, 8
      %s954 = scalar_lea.vmem %s12, %s953
      %p955 = scmp.lt.s32.totalorder %s25, 1
      %s956 = scalar_select %p955, %s25, 1
      %s957 = smul.addr %s956, 8
      %s958 = scalar_lea.vmem %s13, %s957
      // Predicated region
      $region69: #{dag_gnn_forward.1} parent=67 // pred_check
        %p959 = pneg %p300
      $region70: #{dag_gnn_forward.1} parent=67 // pred_check_branch
        %961 = sbr.rel (%p959) target = $region72
      $region71: #{dag_gnn_forward.1} parent=67 // pred_region
        _
      $region72: #{dag_gnn_forward.1} parent=67 // pred_fallthru
        _
      // Predicated region
      $region73: #{dag_gnn_forward.1} parent=67 // pred_check
        %p962 = pneg %p326
      $region74: #{dag_gnn_forward.1} parent=67 // pred_check_branch
        %964 = sbr.rel (%p962) target = $region76
      $region75: #{dag_gnn_forward.1} parent=67 // pred_region
        _
      $region76: #{dag_gnn_forward.1} parent=67 // pred_fallthru
        _
    $region68: #{dag_gnn_forward.1} parent=5 // pred_fallthru
      _
    %p965 = scmp.le.s32.totalorder 2, %s20
    // Predicated region
    $region77: #{dag_gnn_forward.1} parent=5 // pred_check
      %p966 = pneg %p965
    $region78: #{dag_gnn_forward.1} parent=5 // pred_check_branch
      %968 = sbr.rel (%p966) target = $region80
    $region79: #{dag_gnn_forward.1} parent=5 // pred_region
      %s969 = ssub.s32 %s20, 2
      // Predicated region
      $region81: #{dag_gnn_forward.1} parent=79 // pred_check
        %p970 = pneg %p306
      $region82: #{dag_gnn_forward.1} parent=79 // pred_check_branch
        %972 = sbr.rel (%p970) target = $region84
      $region83: #{dag_gnn_forward.1} parent=79 // pred_region
        %p973 = scmp.lt.s32.totalorder %s26, 1
        %s974 = scalar_select %p973, %s26, 1
        %s975 = smul.addr %s974, 8
        %s976 = scalar_lea.vmem %s12, %s975
      $region84: #{dag_gnn_forward.1} parent=79 // pred_fallthru
        _
      // Predicated region
      $region85: #{dag_gnn_forward.1} parent=79 // pred_check
        %p977 = pneg %p332
      $region86: #{dag_gnn_forward.1} parent=79 // pred_check_branch
        %979 = sbr.rel (%p977) target = $region88
      $region87: #{dag_gnn_forward.1} parent=79 // pred_region
        %p980 = scmp.lt.s32.totalorder %s26, 1
        %s981 = scalar_select %p980, %s26, 1
        %s982 = smul.addr %s981, 8
        %s983 = scalar_lea.vmem %s13, %s982
      $region88: #{dag_gnn_forward.1} parent=79 // pred_fallthru
        _
    $region80: #{dag_gnn_forward.1} parent=5 // pred_fallthru
      _
  $region6: #{dag_gnn_forward.1} parent=0 // loop_footer
    %s24 = sadd.s32 1, %s20
  $region7: #{dag_gnn_forward.1} parent=0 // loop_footer_branch
    %19 = sbr.rel target = $region3
  $region8: #{dag_gnn_forward.1} parent=0 // loop_exit
    _

</llo_original>
